<compile_context>
chip_gen: v6e
topology: v6e:2x2x1
jax: 0.10.0
libtpu: 0.0.40
codegen_flags: <defaults>
</compile_context>

<pallas_src>
import functools

import jax
import jax.numpy as jnp
from jax.experimental import pallas as pl
from jax.experimental.pallas import tpu as pltpu


# ----------------------------- helpers -------------------------------------


def _round_up(n, m):
    return ((n + m - 1) // m) * m


def _max_rows(b, c, h1_pad, budget_bytes=12 * 1024 * 1024):
    # Rough per-HW-row VMEM cost of the excite tile: double-buffered x + out,
    # fw in/out, z/z1 temporaries (z1 is h1_pad lanes wide), bf16 copies.
    per_row = 4 * b * (6 * c + 2 * h1_pad) + 16 * c
    return max(8, budget_bytes // per_row)


def _pick_tile_hw(hw, max_rows):
    """Largest multiple-of-8 divisor of hw that fits the VMEM row budget."""
    if hw <= max_rows:
        return hw
    best, t = 0, 8
    while t <= max_rows:
        if hw % t == 0:
            best = t
        t += 8
    return best if best > 0 else hw


# ----------------------------- kernels --------------------------------------


def _squeeze_kernel(x_ref, fc1_w_ref, fc1_b_ref, fc2_w_ref, fc2_b_ref,
                    y_ref, acc_ref, *, inv_hw, inv_b):
    """Accumulate global-avg-pool over HW tiles; MLP + batch-mean at the end."""
    @pl.when(pl.program_id(0) == 0)
    def _init():
        acc_ref[...] = jnp.zeros_like(acc_ref)

    acc_ref[...] += jnp.sum(x_ref[...], axis=1)                    # (B, C)

    @pl.when(pl.program_id(0) == pl.num_programs(0) - 1)
    def _finalize():
        pooled = acc_ref[...] * inv_hw                             # (B, C)
        h = jnp.dot(pooled, fc1_w_ref[...],
                    preferred_element_type=jnp.float32) + fc1_b_ref[...]
        h = jnp.maximum(h, 0.0)
        s = jax.nn.sigmoid(
            jnp.dot(h, fc2_w_ref[...],
                    preferred_element_type=jnp.float32) + fc2_b_ref[...])
        y_ref[...] = jnp.sum(s, axis=0, keepdims=True) * inv_b     # (1, C)


def _excite_kernel(x_ref, fw_ref, y_ref, w1_ref, b1_ref, w2_ref, b2_ref,
                   out_ref, fw_new_ref):
    """Per-HW-tile: conv1(relu)/conv2(sigmoid) (gate folded into w1),
    batch-mean, EMA update of fixed_weights, final gating."""
    x = x_ref[...]                                     # (B, tHW, C) f32
    B, tHW, C = x.shape
    y = y_ref[...]                                     # (1, C) f32

    # bf16 operands for the MXU, f32 accumulation.  y is pre-folded into w1.
    xb = x.reshape(B * tHW, C).astype(jnp.bfloat16)
    z1 = jnp.dot(xb, w1_ref[...],
                 preferred_element_type=jnp.float32) + b1_ref[...]
    z1 = jnp.maximum(z1, 0.0).astype(jnp.bfloat16)     # (B*tHW, h1_pad)
    z = jnp.dot(z1, w2_ref[...],
                preferred_element_type=jnp.float32) + b2_ref[...]
    z = jax.nn.sigmoid(z).reshape(B, tHW, C)           # f32

    t = jnp.mean(z, axis=0)                            # (tHW, C)  mean over B
    fw_new = fw_ref[...] * 0.9 + (t * y) * 0.1         # EMA; y broadcasts
    fw_new_ref[...] = fw_new
    out_ref[...] = fw_new[None, :, :] * x


# ----------------------------- wrapper --------------------------------------


def _prepare_excite_params(y_row, params, h1_pad):
    """Fold the gate y into conv1's weight and zero-pad hidden1 to h1_pad."""
    C, h1 = params["conv1_w"].shape
    w1_eff = y_row.reshape(C, 1) * params["conv1_w"]            # (C, h1) f32
    w1_eff = jnp.pad(w1_eff, ((0, 0), (0, h1_pad - h1)))
    b1 = jnp.pad(params["conv1_b"], ((0, 0), (0, h1_pad - h1)))
    w2 = jnp.pad(params["conv2_w"], ((0, h1_pad - h1), (0, 0)))
    return (w1_eff.astype(jnp.bfloat16), b1.astype(jnp.float32),
            w2.astype(jnp.bfloat16), params["conv2_b"].astype(jnp.float32))


def se_block2_forward(x_nchw, fixed_weights, params, *, tile_hw=None):
    """Training-mode SEBlock2 forward.

    x_nchw:        (B, C, H, W) float32
    fixed_weights: (1, C, H, W) float32  (module state, EMA-updated)
    params:        channels-last weights: fc/conv weights (in,out), biases (1,out)
    Returns (out_nchw, new_fixed_weights).
    """
    B, C, H, W = x_nchw.shape
    HW = H * W
    hidden_fc = params["fc1_w"].shape[1]
    h1 = params["conv1_w"].shape[1]
    h1_pad = _round_up(h1, 128)          # lane-dense conv1 output

    # NCHW -> (B, HW, C): channel axis on the 128-lane dimension.
    # TODO(synk): if the surrounding model is channels-last these transposes
    # (an extra HBM read+write of x/out) disappear entirely.
    x = jnp.transpose(x_nchw, (0, 2, 3, 1)).reshape(B, HW, C)
    fw = jnp.transpose(fixed_weights, (0, 2, 3, 1)).reshape(HW, C)

    if tile_hw is None:
        tile_hw = _pick_tile_hw(HW, _max_rows(B, C, h1_pad))
    assert HW % tile_hw == 0 and (tile_hw % 8 == 0 or tile_hw == HW)
    n_tiles = HW // tile_hw

    cparams_reduce = pltpu.CompilerParams(
        dimension_semantics=("arbitrary",),
        vmem_limit_bytes=32 * 1024 * 1024)
    cparams_parallel = pltpu.CompilerParams(
        dimension_semantics=("parallel",),
        vmem_limit_bytes=32 * 1024 * 1024)

    # ---- pass 1: squeeze -> per-channel gate y (1, C) ----------------------
    y = pl.pallas_call(
        functools.partial(_squeeze_kernel, inv_hw=1.0 / HW, inv_b=1.0 / B),
        grid=(n_tiles,),
        in_specs=[
            pl.BlockSpec((B, tile_hw, C), lambda h: (0, h, 0)),   # x tile
            pl.BlockSpec((C, hidden_fc), lambda h: (0, 0)),       # fc1_w
            pl.BlockSpec((1, hidden_fc), lambda h: (0, 0)),       # fc1_b
            pl.BlockSpec((hidden_fc, C), lambda h: (0, 0)),       # fc2_w
            pl.BlockSpec((1, C), lambda h: (0, 0)),               # fc2_b
        ],
        out_specs=pl.BlockSpec((1, C), lambda h: (0, 0)),
        out_shape=jax.ShapeDtypeStruct((1, C), jnp.float32),
        scratch_shapes=[pltpu.VMEM((B, C), jnp.float32)],
        compiler_params=cparams_reduce,
        cost_estimate=pl.CostEstimate(
            flops=4 * B * C * hidden_fc,
            transcendentals=B * C,
            bytes_accessed=4 * B * HW * C),
    )(x, params["fc1_w"], params["fc1_b"], params["fc2_w"], params["fc2_b"])

    # ---- pass 2: excite + EMA + gating, tiled & pipelined over HW ----------
    w1_eff, b1_pad, w2_pad, b2 = _prepare_excite_params(y, params, h1_pad)

    out, fw_new = pl.pallas_call(
        _excite_kernel,
        grid=(n_tiles,),
        in_specs=[
            pl.BlockSpec((B, tile_hw, C), lambda h: (0, h, 0)),   # x tile
            pl.BlockSpec((tile_hw, C), lambda h: (h, 0)),         # fw tile
            pl.BlockSpec((1, C), lambda h: (0, 0)),               # y
            pl.BlockSpec((C, h1_pad), lambda h: (0, 0)),          # w1 (folded, bf16)
            pl.BlockSpec((1, h1_pad), lambda h: (0, 0)),          # b1
            pl.BlockSpec((h1_pad, C), lambda h: (0, 0)),          # w2 (bf16)
            pl.BlockSpec((1, C), lambda h: (0, 0)),               # b2
        ],
        out_specs=(
            pl.BlockSpec((B, tile_hw, C), lambda h: (0, h, 0)),   # out tile
            pl.BlockSpec((tile_hw, C), lambda h: (h, 0)),         # fw_new tile
        ),
        out_shape=(
            jax.ShapeDtypeStruct((B, HW, C), jnp.float32),
            jax.ShapeDtypeStruct((HW, C), jnp.float32),
        ),
        input_output_aliases={1: 1},          # reuse fw's HBM buffer for fw_new
        compiler_params=cparams_parallel,
        cost_estimate=pl.CostEstimate(
            flops=4 * B * HW * C * h1_pad,
            transcendentals=B * HW * C,
            bytes_accessed=4 * (2 * B * HW * C + 2 * HW * C)),
    )(x, fw, y, w1_eff, b1_pad, w2_pad, b2)

    out_nchw = jnp.transpose(out.reshape(B, H, W, C), (0, 3, 1, 2))
    fw_nchw = jnp.transpose(fw_new.reshape(1, H, W, C), (0, 3, 1, 2))
    return out_nchw, fw_nchw


# ----------------------------- reference ------------------------------------


def _reference_forward(x_nchw, fixed_weights, params, *,
                       matmul_dtype=jnp.float32, fold_gate=False):
    """Pure-JAX reference.  With default args this is the literal PyTorch
    training branch in f32; with (bfloat16, fold_gate=True) it mirrors the
    kernel's bf16 / gate-folded pipeline exactly."""
    B, C, H, W = x_nchw.shape
    pooled = jnp.mean(x_nchw, axis=(2, 3))                             # (B, C)
    h1 = jnp.maximum(pooled @ params["fc1_w"] + params["fc1_b"], 0.0)
    s = jax.nn.sigmoid(h1 @ params["fc2_w"] + params["fc2_b"])         # (B, C)
    y = jnp.mean(s, axis=0)                                            # (C,)

    xl = jnp.transpose(x_nchw, (0, 2, 3, 1))                           # (B,H,W,C)
    if fold_gate:
        w1 = (y[:, None] * params["conv1_w"]).astype(matmul_dtype)
        xin = xl.astype(matmul_dtype)
    else:
        w1 = params["conv1_w"].astype(matmul_dtype)
        xin = (xl * y).astype(matmul_dtype)
    z1 = jnp.maximum(
        jnp.dot(xin, w1, preferred_element_type=jnp.float32)
        + params["conv1_b"], 0.0)
    z = jax.nn.sigmoid(
        jnp.dot(z1.astype(matmul_dtype),
                params["conv2_w"].astype(matmul_dtype),
                preferred_element_type=jnp.float32) + params["conv2_b"])
    z = jnp.transpose(z, (0, 3, 1, 2))                                 # (B,C,H,W)
    t = jnp.mean(z, axis=0, keepdims=True)                             # (1,C,H,W)
    y4 = y.reshape(1, C, 1, 1)
    fw_new = fixed_weights * 0.9 + t * y4 * 0.1
    return fw_new * x_nchw, fw_new


# ----------------------------- demo / check ---------------------------------


if __name__ == "__main__":
    # Small shapes consistent with the module: ratio=16 => channels >= 16.
    B, C, H, W = 2, 32, 8, 8
    ratio = 16
    hidden = C // ratio        # fc bottleneck
    hidden1 = C // ratio       # conv bottleneck

    key = jax.random.PRNGKey(0)
    ks = jax.random.split(key, 9)

    # Deterministic synthetic parameters, channels-last (in, out) layout.
    params = {
        "fc1_w": 0.1 * jax.random.normal(ks[0], (C, hidden), jnp.float32),
        "fc1_b": 0.1 * jax.random.normal(ks[1], (1, hidden), jnp.float32),
        "fc2_w": 0.1 * jax.random.normal(ks[2], (hidden, C), jnp.float32),
        "fc2_b": 0.1 * jax.random.normal(ks[3], (1, C), jnp.float32),
        "conv1_w": 0.1 * jax.random.normal(ks[4], (C, hidden1), jnp.float32),
        "conv1_b": 0.1 * jax.random.normal(ks[5], (1, hidden1), jnp.float32),
        "conv2_w": 0.1 * jax.random.normal(ks[6], (hidden1, C), jnp.float32),
        "conv2_b": 0.1 * jax.random.normal(ks[7], (1, C), jnp.float32),
    }
    fixed_weights = jnp.ones((1, C, H, W), jnp.float32)   # as in the module
    x = jax.random.normal(ks[8], (B, C, H, W), jnp.float32)

    fwd = jax.jit(se_block2_forward, static_argnames=("tile_hw",))
    out, fw_new = fwd(x, fixed_weights, params, tile_hw=16)  # 4-step HW grid
    out = jax.block_until_ready(out)
    fw_new = jax.block_until_ready(fw_new)

    # Strict check: mirror of the kernel's bf16 / gate-folded pipeline.
    ref_out, ref_fw = _reference_forward(
        x, fixed_weights, params, matmul_dtype=jnp.bfloat16, fold_gate=True)
    assert jnp.allclose(out, ref_out, atol=1e-4, rtol=1e-4)
    assert jnp.allclose(fw_new, ref_fw, atol=1e-4, rtol=1e-4)

    # Semantics check: literal PyTorch f32 forward (bf16 matmuls add ~1e-4).
    ref_out32, ref_fw32 = _reference_forward(x, fixed_weights, params)
    assert jnp.allclose(out, ref_out32, atol=3e-3, rtol=3e-3)
    assert jnp.allclose(fw_new, ref_fw32, atol=3e-3, rtol=3e-3)

    print("KERNEL_OK")
</pallas_src>

<mosaic_0001>
module attributes {stable_mosaic.version = 11 : i64} {
  func.func @_squeeze_kernel(%arg0: i32, %arg1: memref<2x16x32xf32, #tpu.memory_space<vmem>>, %arg2: memref<32x2xf32, #tpu.memory_space<vmem>>, %arg3: memref<1x2xf32, #tpu.memory_space<vmem>>, %arg4: memref<2x32xf32, #tpu.memory_space<vmem>>, %arg5: memref<1x32xf32, #tpu.memory_space<vmem>>, %arg6: memref<1x32xf32, #tpu.memory_space<vmem>>, %arg7: memref<2x32xf32, #tpu.memory_space<vmem>>) attributes {dimension_semantics = [#tpu.dimension_semantics<arbitrary>], iteration_bounds = array<i64: 4>, scalar_prefetch = 0 : i64, scratch_operands = 1 : i64, tpu.core_type = #tpu.core_type<tc>, window_params = [{transform_indices = @transform_0, window_bounds = array<i64: 2, 16, 32>}, {pipeline_mode = #tpu.pipeline_mode<synchronous>, transform_indices = @transform_1, window_bounds = array<i64: 32, 2>}, {pipeline_mode = #tpu.pipeline_mode<synchronous>, transform_indices = @transform_2, window_bounds = array<i64: 1, 2>}, {pipeline_mode = #tpu.pipeline_mode<synchronous>, transform_indices = @transform_3, window_bounds = array<i64: 2, 32>}, {pipeline_mode = #tpu.pipeline_mode<synchronous>, transform_indices = @transform_4, window_bounds = array<i64: 1, 32>}, {pipeline_mode = #tpu.pipeline_mode<synchronous>, transform_indices = @transform_5, window_bounds = array<i64: 1, 32>}]} {
    %c0_i32 = arith.constant 0 : i32
    %0 = arith.cmpi eq, %arg0, %c0_i32 : i32
    %1 = arith.extui %0 : i1 to i32
    %c0_i32_0 = arith.constant 0 : i32
    %2 = arith.cmpi ne, %1, %c0_i32_0 : i32
    scf.if %2 {
      %cst_8 = arith.constant 0.000000e+00 : f32
      %11 = vector.broadcast %cst_8 : f32 to vector<2x32xf32>
      %c0_9 = arith.constant 0 : index
      %c0_10 = arith.constant 0 : index
      %12 = vector.load %arg7[%c0_9, %c0_10] : memref<2x32xf32, #tpu.memory_space<vmem>>, vector<2x32xf32>
      tpu.vector_store %arg7[%c0_9, %c0_10], %11 {strides = array<i32>} : memref<2x32xf32, #tpu.memory_space<vmem>>, vector<2x32xf32>,
    } else {
    }
    %c0 = arith.constant 0 : index
    %c0_1 = arith.constant 0 : index
    %3 = vector.load %arg7[%c0, %c0_1] : memref<2x32xf32, #tpu.memory_space<vmem>>, vector<2x32xf32>
    %c0_2 = arith.constant 0 : index
    %c0_3 = arith.constant 0 : index
    %c0_4 = arith.constant 0 : index
    %4 = vector.load %arg1[%c0_2, %c0_3, %c0_4] : memref<2x16x32xf32, #tpu.memory_space<vmem>>, vector<2x16x32xf32>
    %cst = arith.constant dense<0.000000e+00> : vector<2x32xf32>
    %5 = vector.multi_reduction <add>, %4, %cst [1] : vector<2x16x32xf32> to vector<2x32xf32>
    %6 = arith.addf %3, %5 : vector<2x32xf32>
    %c0_5 = arith.constant 0 : index
    %c0_6 = arith.constant 0 : index
    %7 = vector.load %arg7[%c0_5, %c0_6] : memref<2x32xf32, #tpu.memory_space<vmem>>, vector<2x32xf32>
    tpu.vector_store %arg7[%c0_5, %c0_6], %6 {strides = array<i32>} : memref<2x32xf32, #tpu.memory_space<vmem>>, vector<2x32xf32>,
    %c3_i32 = arith.constant 3 : i32
    %8 = arith.cmpi eq, %arg0, %c3_i32 : i32
    %9 = arith.extui %8 : i1 to i32
    %c0_i32_7 = arith.constant 0 : i32
    %10 = arith.cmpi ne, %9, %c0_i32_7 : i32
    scf.if %10 {
      %c0_8 = arith.constant 0 : index
      %c0_9 = arith.constant 0 : index
      %11 = vector.load %arg7[%c0_8, %c0_9] : memref<2x32xf32, #tpu.memory_space<vmem>>, vector<2x32xf32>
      %cst_10 = arith.constant 1.562500e-02 : f32
      %12 = vector.broadcast %cst_10 : f32 to vector<2x32xf32>
      %13 = arith.mulf %11, %12 : vector<2x32xf32>
      %c0_11 = arith.constant 0 : index
      %c0_12 = arith.constant 0 : index
      %14 = vector.load %arg2[%c0_11, %c0_12] : memref<32x2xf32, #tpu.memory_space<vmem>>, vector<32x2xf32>
      %cst_13 = arith.constant dense<0.000000e+00> : vector<2x2xf32>
      %15 = tpu.matmul %13, %14, %cst_13 {dimension_numbers = #tpu.dot_dimension_numbers<[1], [0], [0], [1], [0, 0, 1, 1], [], []>} : vector<2x32xf32>, vector<32x2xf32>, vector<2x2xf32> -> vector<2x2xf32>
      %c0_14 = arith.constant 0 : index
      %c0_15 = arith.constant 0 : index
      %16 = vector.load %arg3[%c0_14, %c0_15] : memref<1x2xf32, #tpu.memory_space<vmem>>, vector<1x2xf32>
      %17 = vector.broadcast %16 : vector<1x2xf32> to vector<2x2xf32>
      %18 = arith.addf %15, %17 : vector<2x2xf32>
      %cst_16 = arith.constant 0.000000e+00 : f32
      %19 = vector.broadcast %cst_16 : f32 to vector<2x2xf32>
      %20 = arith.maximumf %18, %19 : vector<2x2xf32>
      %c0_17 = arith.constant 0 : index
      %c0_18 = arith.constant 0 : index
      %21 = vector.load %arg4[%c0_17, %c0_18] : memref<2x32xf32, #tpu.memory_space<vmem>>, vector<2x32xf32>
      %cst_19 = arith.constant dense<0.000000e+00> : vector<2x32xf32>
      %22 = tpu.matmul %20, %21, %cst_19 {dimension_numbers = #tpu.dot_dimension_numbers<[1], [0], [0], [1], [0, 0, 1, 1], [], []>} : vector<2x2xf32>, vector<2x32xf32>, vector<2x32xf32> -> vector<2x32xf32>
      %c0_20 = arith.constant 0 : index
      %c0_21 = arith.constant 0 : index
      %23 = vector.load %arg5[%c0_20, %c0_21] : memref<1x32xf32, #tpu.memory_space<vmem>>, vector<1x32xf32>
      %24 = vector.broadcast %23 : vector<1x32xf32> to vector<2x32xf32>
      %25 = arith.addf %22, %24 : vector<2x32xf32>
      %26 = arith.negf %25 : vector<2x32xf32>
      %27 = math.exp %26 : vector<2x32xf32>
      %cst_22 = arith.constant 1.000000e+00 : f32
      %28 = vector.broadcast %cst_22 : f32 to vector<2x32xf32>
      %29 = arith.addf %28, %27 : vector<2x32xf32>
      %30 = arith.divf %28, %29 : vector<2x32xf32>
      %cst_23 = arith.constant dense<0.000000e+00> : vector<32xf32>
      %31 = vector.multi_reduction <add>, %30, %cst_23 [0] : vector<2x32xf32> to vector<32xf32>
      %32 = vector.shape_cast %31 : vector<32xf32> to vector<1x32xf32>
      %cst_24 = arith.constant 5.000000e-01 : f32
      %33 = vector.broadcast %cst_24 : f32 to vector<1x32xf32>
      %34 = arith.mulf %32, %33 : vector<1x32xf32>
      %c0_25 = arith.constant 0 : index
      %c0_26 = arith.constant 0 : index
      %35 = vector.load %arg6[%c0_25, %c0_26] : memref<1x32xf32, #tpu.memory_space<vmem>>, vector<1x32xf32>
      tpu.vector_store %arg6[%c0_25, %c0_26], %34 {strides = array<i32>} : memref<1x32xf32, #tpu.memory_space<vmem>>, vector<1x32xf32>,
    } else {
    }
    return
  }
  func.func @transform_0(%arg0: i32) -> (i32, i32, i32) {
    %c0_i32 = arith.constant 0 : i32
    %c0_i32_0 = arith.constant 0 : i32
    %c0_i32_1 = arith.constant 0 : i32
    return %c0_i32, %arg0, %c0_i32_0 : i32, i32, i32
  }
  func.func @transform_1(%arg0: i32) -> (i32, i32) {
    %c0_i32 = arith.constant 0 : i32
    %c0_i32_0 = arith.constant 0 : i32
    %c0_i32_1 = arith.constant 0 : i32
    return %c0_i32, %c0_i32_0 : i32, i32
  }
  func.func @transform_2(%arg0: i32) -> (i32, i32) {
    %c0_i32 = arith.constant 0 : i32
    %c0_i32_0 = arith.constant 0 : i32
    %c0_i32_1 = arith.constant 0 : i32
    return %c0_i32, %c0_i32_0 : i32, i32
  }
  func.func @transform_3(%arg0: i32) -> (i32, i32) {
    %c0_i32 = arith.constant 0 : i32
    %c0_i32_0 = arith.constant 0 : i32
    %c0_i32_1 = arith.constant 0 : i32
    return %c0_i32, %c0_i32_0 : i32, i32
  }
  func.func @transform_4(%arg0: i32) -> (i32, i32) {
    %c0_i32 = arith.constant 0 : i32
    %c0_i32_0 = arith.constant 0 : i32
    %c0_i32_1 = arith.constant 0 : i32
    return %c0_i32, %c0_i32_0 : i32, i32
  }
  func.func @transform_5(%arg0: i32) -> (i32, i32) {
    %c0_i32 = arith.constant 0 : i32
    %c0_i32_0 = arith.constant 0 : i32
    %c0_i32_1 = arith.constant 0 : i32
    return %c0_i32, %c0_i32_0 : i32, i32
  }
}

module attributes {stable_mosaic.version = 11 : i64} {
  func.func @_excite_kernel(%arg0: i32, %arg1: memref<2x16x32xf32, #tpu.memory_space<vmem>>, %arg2: memref<16x32xf32, #tpu.memory_space<vmem>>, %arg3: memref<1x32xf32, #tpu.memory_space<vmem>>, %arg4: memref<32x128xbf16, #tpu.memory_space<vmem>>, %arg5: memref<1x128xf32, #tpu.memory_space<vmem>>, %arg6: memref<128x32xbf16, #tpu.memory_space<vmem>>, %arg7: memref<1x32xf32, #tpu.memory_space<vmem>>, %arg8: memref<2x16x32xf32, #tpu.memory_space<vmem>>, %arg9: memref<16x32xf32, #tpu.memory_space<vmem>>) attributes {dimension_semantics = [#tpu.dimension_semantics<parallel>], iteration_bounds = array<i64: 4>, scalar_prefetch = 0 : i64, scratch_operands = 0 : i64, tpu.core_type = #tpu.core_type<tc>, window_params = [{transform_indices = @transform_0, window_bounds = array<i64: 2, 16, 32>}, {transform_indices = @transform_1, window_bounds = array<i64: 16, 32>}, {pipeline_mode = #tpu.pipeline_mode<synchronous>, transform_indices = @transform_2, window_bounds = array<i64: 1, 32>}, {pipeline_mode = #tpu.pipeline_mode<synchronous>, transform_indices = @transform_3, window_bounds = array<i64: 32, 128>}, {pipeline_mode = #tpu.pipeline_mode<synchronous>, transform_indices = @transform_4, window_bounds = array<i64: 1, 128>}, {pipeline_mode = #tpu.pipeline_mode<synchronous>, transform_indices = @transform_5, window_bounds = array<i64: 128, 32>}, {pipeline_mode = #tpu.pipeline_mode<synchronous>, transform_indices = @transform_6, window_bounds = array<i64: 1, 32>}, {transform_indices = @transform_7, window_bounds = array<i64: 2, 16, 32>}, {transform_indices = @transform_8, window_bounds = array<i64: 16, 32>}]} {
    %c0 = arith.constant 0 : index
    %c0_0 = arith.constant 0 : index
    %c0_1 = arith.constant 0 : index
    %0 = vector.load %arg1[%c0, %c0_0, %c0_1] : memref<2x16x32xf32, #tpu.memory_space<vmem>>, vector<2x16x32xf32>
    %c0_2 = arith.constant 0 : index
    %c0_3 = arith.constant 0 : index
    %1 = vector.load %arg3[%c0_2, %c0_3] : memref<1x32xf32, #tpu.memory_space<vmem>>, vector<1x32xf32>
    %2 = vector.shape_cast %0 : vector<2x16x32xf32> to vector<32x32xf32>
    %3 = arith.truncf %2 : vector<32x32xf32> to vector<32x32xbf16>
    %c0_4 = arith.constant 0 : index
    %c0_5 = arith.constant 0 : index
    %4 = vector.load %arg4[%c0_4, %c0_5] : memref<32x128xbf16, #tpu.memory_space<vmem>>, vector<32x128xbf16>
    %cst = arith.constant dense<0.000000e+00> : vector<32x128xf32>
    %5 = tpu.matmul %3, %4, %cst {dimension_numbers = #tpu.dot_dimension_numbers<[1], [0], [0], [1], [0, 0, 1, 1], [], []>} : vector<32x32xbf16>, vector<32x128xbf16>, vector<32x128xf32> -> vector<32x128xf32>
    %c0_6 = arith.constant 0 : index
    %c0_7 = arith.constant 0 : index
    %6 = vector.load %arg5[%c0_6, %c0_7] : memref<1x128xf32, #tpu.memory_space<vmem>>, vector<1x128xf32>
    %7 = vector.broadcast %6 : vector<1x128xf32> to vector<32x128xf32>
    %8 = arith.addf %5, %7 : vector<32x128xf32>
    %cst_8 = arith.constant 0.000000e+00 : f32
    %9 = vector.broadcast %cst_8 : f32 to vector<32x128xf32>
    %10 = arith.maximumf %8, %9 : vector<32x128xf32>
    %11 = arith.truncf %10 : vector<32x128xf32> to vector<32x128xbf16>
    %c0_9 = arith.constant 0 : index
    %c0_10 = arith.constant 0 : index
    %12 = vector.load %arg6[%c0_9, %c0_10] : memref<128x32xbf16, #tpu.memory_space<vmem>>, vector<128x32xbf16>
    %cst_11 = arith.constant dense<0.000000e+00> : vector<32x32xf32>
    %13 = tpu.matmul %11, %12, %cst_11 {dimension_numbers = #tpu.dot_dimension_numbers<[1], [0], [0], [1], [0, 0, 1, 1], [], []>} : vector<32x128xbf16>, vector<128x32xbf16>, vector<32x32xf32> -> vector<32x32xf32>
    %c0_12 = arith.constant 0 : index
    %c0_13 = arith.constant 0 : index
    %14 = vector.load %arg7[%c0_12, %c0_13] : memref<1x32xf32, #tpu.memory_space<vmem>>, vector<1x32xf32>
    %15 = vector.broadcast %14 : vector<1x32xf32> to vector<32x32xf32>
    %16 = arith.addf %13, %15 : vector<32x32xf32>
    %17 = arith.negf %16 : vector<32x32xf32>
    %18 = math.exp %17 : vector<32x32xf32>
    %cst_14 = arith.constant 1.000000e+00 : f32
    %19 = vector.broadcast %cst_14 : f32 to vector<32x32xf32>
    %20 = arith.addf %19, %18 : vector<32x32xf32>
    %21 = arith.divf %19, %20 : vector<32x32xf32>
    %22 = vector.shape_cast %21 : vector<32x32xf32> to vector<2x16x32xf32>
    %cst_15 = arith.constant dense<0.000000e+00> : vector<16x32xf32>
    %23 = vector.multi_reduction <add>, %22, %cst_15 [0] : vector<2x16x32xf32> to vector<16x32xf32>
    %cst_16 = arith.constant 2.000000e+00 : f32
    %24 = vector.broadcast %cst_16 : f32 to vector<16x32xf32>
    %25 = arith.divf %23, %24 : vector<16x32xf32>
    %c0_17 = arith.constant 0 : index
    %c0_18 = arith.constant 0 : index
    %26 = vector.load %arg2[%c0_17, %c0_18] : memref<16x32xf32, #tpu.memory_space<vmem>>, vector<16x32xf32>
    %cst_19 = arith.constant 0.899999976 : f32
    %27 = vector.broadcast %cst_19 : f32 to vector<16x32xf32>
    %28 = arith.mulf %26, %27 : vector<16x32xf32>
    %29 = vector.broadcast %1 : vector<1x32xf32> to vector<16x32xf32>
    %30 = arith.mulf %25, %29 : vector<16x32xf32>
    %cst_20 = arith.constant 1.000000e-01 : f32
    %31 = vector.broadcast %cst_20 : f32 to vector<16x32xf32>
    %32 = arith.mulf %30, %31 : vector<16x32xf32>
    %33 = arith.addf %28, %32 : vector<16x32xf32>
    %c0_21 = arith.constant 0 : index
    %c0_22 = arith.constant 0 : index
    %34 = vector.load %arg9[%c0_21, %c0_22] : memref<16x32xf32, #tpu.memory_space<vmem>>, vector<16x32xf32>
    tpu.vector_store %arg9[%c0_21, %c0_22], %33 {strides = array<i32>} : memref<16x32xf32, #tpu.memory_space<vmem>>, vector<16x32xf32>,
    %35 = vector.shape_cast %33 : vector<16x32xf32> to vector<1x16x32xf32>
    %36 = vector.broadcast %35 : vector<1x16x32xf32> to vector<2x16x32xf32>
    %37 = arith.mulf %36, %0 : vector<2x16x32xf32>
    %c0_23 = arith.constant 0 : index
    %c0_24 = arith.constant 0 : index
    %c0_25 = arith.constant 0 : index
    %38 = vector.load %arg8[%c0_23, %c0_24, %c0_25] : memref<2x16x32xf32, #tpu.memory_space<vmem>>, vector<2x16x32xf32>
    tpu.vector_store %arg8[%c0_23, %c0_24, %c0_25], %37 {strides = array<i32>} : memref<2x16x32xf32, #tpu.memory_space<vmem>>, vector<2x16x32xf32>,
    return
  }
  func.func @transform_0(%arg0: i32) -> (i32, i32, i32) {
    %c0_i32 = arith.constant 0 : i32
    %c0_i32_0 = arith.constant 0 : i32
    %c0_i32_1 = arith.constant 0 : i32
    return %c0_i32, %arg0, %c0_i32_0 : i32, i32, i32
  }
  func.func @transform_1(%arg0: i32) -> (i32, i32) {
    %c0_i32 = arith.constant 0 : i32
    %c0_i32_0 = arith.constant 0 : i32
    return %arg0, %c0_i32 : i32, i32
  }
  func.func @transform_2(%arg0: i32) -> (i32, i32) {
    %c0_i32 = arith.constant 0 : i32
    %c0_i32_0 = arith.constant 0 : i32
    %c0_i32_1 = arith.constant 0 : i32
    return %c0_i32, %c0_i32_0 : i32, i32
  }
  func.func @transform_3(%arg0: i32) -> (i32, i32) {
    %c0_i32 = arith.constant 0 : i32
    %c0_i32_0 = arith.constant 0 : i32
    %c0_i32_1 = arith.constant 0 : i32
    return %c0_i32, %c0_i32_0 : i32, i32
  }
  func.func @transform_4(%arg0: i32) -> (i32, i32) {
    %c0_i32 = arith.constant 0 : i32
    %c0_i32_0 = arith.constant 0 : i32
    %c0_i32_1 = arith.constant 0 : i32
    return %c0_i32, %c0_i32_0 : i32, i32
  }
  func.func @transform_5(%arg0: i32) -> (i32, i32) {
    %c0_i32 = arith.constant 0 : i32
    %c0_i32_0 = arith.constant 0 : i32
    %c0_i32_1 = arith.constant 0 : i32
    return %c0_i32, %c0_i32_0 : i32, i32
  }
  func.func @transform_6(%arg0: i32) -> (i32, i32) {
    %c0_i32 = arith.constant 0 : i32
    %c0_i32_0 = arith.constant 0 : i32
    %c0_i32_1 = arith.constant 0 : i32
    return %c0_i32, %c0_i32_0 : i32, i32
  }
  func.func @transform_7(%arg0: i32) -> (i32, i32, i32) {
    %c0_i32 = arith.constant 0 : i32
    %c0_i32_0 = arith.constant 0 : i32
    %c0_i32_1 = arith.constant 0 : i32
    return %c0_i32, %arg0, %c0_i32_0 : i32, i32, i32
  }
  func.func @transform_8(%arg0: i32) -> (i32, i32) {
    %c0_i32 = arith.constant 0 : i32
    %c0_i32_0 = arith.constant 0 : i32
    return %arg0, %c0_i32 : i32, i32
  }
}

</mosaic_0001>

<llo_original>
// kernel: se_block2_forward.2
$region0: #{se_block2_forward.2}
  #allocation0 [shape = 'u32[]', space=smem, size = 0x4, offset = 0x4, fixed_abs, tag = 'smem constant byte address 0x4 - core index']
  #allocation1 [shape = 'u32[144,128]{1,0:T(1,128)}', space=vmem, size = 0x12000, scoped, tag = 'internal scratch']
  #allocation2 [shape = 'f32[2,32]{1,0:T(2,128)}', space=vmem, size = 0x400, scoped, tag = 'scratch operand']
  %s0 = inlined_call_operand.vmem [shape: f32[2,64,32], index: 0, kind: input, shape index: {}]
  %s1 = inlined_call_operand.vmem [shape: f32[32,2], index: 1, kind: input, shape index: {}]
  %s2 = inlined_call_operand.vmem [shape: f32[1,2], index: 2, kind: input, shape index: {}]
  %s3 = inlined_call_operand.vmem [shape: f32[2,32], index: 3, kind: input, shape index: {}]
  %s4 = inlined_call_operand.vmem [shape: f32[1,32], index: 4, kind: input, shape index: {}]
  %s5 = inlined_call_operand.vmem [shape: f32[1,32], index: 5, kind: output, shape index: {}]
  %s6 = sld [smem:[#allocation0]]
  $region99: #{se_block2_forward.2} parent=0
    _
  %s8 = ssub.s32 1, %s6
  %s9 = scalar_select 0, %s8, %s6
  $region1: #{se_block2_forward.2} parent=0
    #allocation3 [shape = 'u8[32768]{0}', space=vmem, size = 0x8000, scoped, tag = 'input window, operand 0']
    loop: start=0, step=1, limit=6
    $region2: #{se_block2_forward.2} parent=1 // loop_pre_header
      _
    $region3: #{se_block2_forward.2} parent=1 // loop_header
      %s11 = sphi 0, %s15
      %p12 = scmp.ge.s32.totalorder %s11, 6
      %s21 = sphi 0, %s23
      %s24 = sphi 0, %s21
      %s25 = sphi 0, %s24
      %s41 = sphi 0, %s25
      %s45 = sphi 0, %s45
      %s47 = sphi 0, %s45
      %s48 = sphi 0, %s47
      %s62 = sphi 0, %s48
      %s66 = sphi 0, %s66
      %s68 = sphi 0, %s66
      %s69 = sphi 0, %s68
      %s83 = sphi 0, %s69
      %s87 = sphi 0, %s87
      %s89 = sphi 0, %s87
      %s90 = sphi 0, %s89
      %s104 = sphi 0, %s90
      %s108 = sphi 0, %s108
      %s110 = sphi 0, %s108
      %s111 = sphi 0, %s110
      %s125 = sphi 0, %s111
      %s129 = sphi 0, %s129
      %s131 = sphi 0, %s129
      %s132 = sphi 0, %s131
      %s146 = sphi 0, %s132
    $region4: #{se_block2_forward.2} parent=1 // loop_header_branch
      %14 = sbr.rel (%p12) target = $region8
    $region5: #{se_block2_forward.2} parent=1 // loop_body
      %s16 = ssub.s32 %s11, 1
      %s17 = ssub.s32 %s11, 2
      %s18 = sadd.s32 %s11, 1
      %s19 = ssub.s32 %s11, %s18
      %p20 = scmp.eq.s32.totalorder %s19, 0
      %s22 = sadd.s32 %s21, 1
      %s23 = scalar_select %p20, %s21, %s22
      %p26 = pneg %p20
      %p27 = scmp.eq.s32.totalorder %s11, 3
      %p28 = por %p26, %p27
      %p29 = scmp.ne.s32.totalorder %s21, %s24
      %p30 = scmp.eq.s32.totalorder %s11, 0
      %p31 = por %p29, %p30
      %p32 = scmp.ne.s32.totalorder %s21, %s24
      %p33 = scmp.eq.s32.totalorder %s16, 3
      %p34 = por %p32, %p33
      %p35 = scmp.ne.s32.totalorder %s24, %s25
      %p36 = scmp.eq.s32.totalorder %s16, 0
      %p37 = por %p35, %p36
      %p38 = scmp.ne.s32.totalorder %s24, %s25
      %p39 = scmp.eq.s32.totalorder %s17, 3
      %p40 = por %p38, %p39
      %p42 = scmp.ne.s32.totalorder %s25, %s41
      %p43 = scmp.eq.s32.totalorder %s17, 0
      %p44 = por %p42, %p43
      %s46 = sadd.s32 %s45, 1
      %p49 = scmp.eq.s32.totalorder %s11, 3
      %p50 = scmp.ne.s32.totalorder %s45, %s47
      %p51 = scmp.eq.s32.totalorder %s11, 0
      %p52 = por %p50, %p51
      %p53 = scmp.ne.s32.totalorder %s45, %s47
      %p54 = scmp.eq.s32.totalorder %s16, 3
      %p55 = por %p53, %p54
      %p56 = scmp.ne.s32.totalorder %s47, %s48
      %p57 = scmp.eq.s32.totalorder %s16, 0
      %p58 = por %p56, %p57
      %p59 = scmp.ne.s32.totalorder %s47, %s48
      %p60 = scmp.eq.s32.totalorder %s17, 3
      %p61 = por %p59, %p60
      %p63 = scmp.ne.s32.totalorder %s48, %s62
      %p64 = scmp.eq.s32.totalorder %s17, 0
      %p65 = por %p63, %p64
      %s67 = sadd.s32 %s66, 1
      %p70 = scmp.eq.s32.totalorder %s11, 3
      %p71 = scmp.ne.s32.totalorder %s66, %s68
      %p72 = scmp.eq.s32.totalorder %s11, 0
      %p73 = por %p71, %p72
      %p74 = scmp.ne.s32.totalorder %s66, %s68
      %p75 = scmp.eq.s32.totalorder %s16, 3
      %p76 = por %p74, %p75
      %p77 = scmp.ne.s32.totalorder %s68, %s69
      %p78 = scmp.eq.s32.totalorder %s16, 0
      %p79 = por %p77, %p78
      %p80 = scmp.ne.s32.totalorder %s68, %s69
      %p81 = scmp.eq.s32.totalorder %s17, 3
      %p82 = por %p80, %p81
      %p84 = scmp.ne.s32.totalorder %s69, %s83
      %p85 = scmp.eq.s32.totalorder %s17, 0
      %p86 = por %p84, %p85
      %s88 = sadd.s32 %s87, 1
      %p91 = scmp.eq.s32.totalorder %s11, 3
      %p92 = scmp.ne.s32.totalorder %s87, %s89
      %p93 = scmp.eq.s32.totalorder %s11, 0
      %p94 = por %p92, %p93
      %p95 = scmp.ne.s32.totalorder %s87, %s89
      %p96 = scmp.eq.s32.totalorder %s16, 3
      %p97 = por %p95, %p96
      %p98 = scmp.ne.s32.totalorder %s89, %s90
      %p99 = scmp.eq.s32.totalorder %s16, 0
      %p100 = por %p98, %p99
      %p101 = scmp.ne.s32.totalorder %s89, %s90
      %p102 = scmp.eq.s32.totalorder %s17, 3
      %p103 = por %p101, %p102
      %p105 = scmp.ne.s32.totalorder %s90, %s104
      %p106 = scmp.eq.s32.totalorder %s17, 0
      %p107 = por %p105, %p106
      %s109 = sadd.s32 %s108, 1
      %p112 = scmp.eq.s32.totalorder %s11, 3
      %p113 = scmp.ne.s32.totalorder %s108, %s110
      %p114 = scmp.eq.s32.totalorder %s11, 0
      %p115 = por %p113, %p114
      %p116 = scmp.ne.s32.totalorder %s108, %s110
      %p117 = scmp.eq.s32.totalorder %s16, 3
      %p118 = por %p116, %p117
      %p119 = scmp.ne.s32.totalorder %s110, %s111
      %p120 = scmp.eq.s32.totalorder %s16, 0
      %p121 = por %p119, %p120
      %p122 = scmp.ne.s32.totalorder %s110, %s111
      %p123 = scmp.eq.s32.totalorder %s17, 3
      %p124 = por %p122, %p123
      %p126 = scmp.ne.s32.totalorder %s111, %s125
      %p127 = scmp.eq.s32.totalorder %s17, 0
      %p128 = por %p126, %p127
      %s130 = sadd.s32 %s129, 1
      %p133 = scmp.eq.s32.totalorder %s11, 3
      %p134 = scmp.ne.s32.totalorder %s129, %s131
      %p135 = scmp.eq.s32.totalorder %s11, 0
      %p136 = por %p134, %p135
      %p137 = scmp.ne.s32.totalorder %s129, %s131
      %p138 = scmp.eq.s32.totalorder %s16, 3
      %p139 = por %p137, %p138
      %p140 = scmp.ne.s32.totalorder %s131, %s132
      %p141 = scmp.eq.s32.totalorder %s16, 0
      %p142 = por %p140, %p141
      %p143 = scmp.ne.s32.totalorder %s131, %s132
      %p144 = scmp.eq.s32.totalorder %s17, 3
      %p145 = por %p143, %p144
      %p147 = scmp.ne.s32.totalorder %s132, %s146
      %p148 = scmp.eq.s32.totalorder %s17, 0
      %p149 = por %p147, %p148
      %p150 = scmp.le.s32.totalorder 1, %s11
      %p151 = scmp.lt.s32.totalorder %s11, 5
      %p152 = pnand %p150, %p151
      %p153 = pneg %p152
      // Predicated region
      $region9: #{se_block2_forward.2} parent=5 // pred_check
        _
      $region10: #{se_block2_forward.2} parent=5 // pred_check_branch
        %155 = sbr.rel (%p152) target = $region12
      $region11: #{se_block2_forward.2} parent=5 // pred_region
        %s156 = ssub.s32 %s11, 1
        // Predicated region
        $region13: #{se_block2_forward.2} parent=11 // pred_check
          %p157 = pneg %p58
        $region14: #{se_block2_forward.2} parent=11 // pred_check_branch
          %159 = sbr.rel (%p157) target = $region16
        $region15: #{se_block2_forward.2} parent=11 // pred_region
          _
        $region16: #{se_block2_forward.2} parent=11 // pred_fallthru
          _
        // Predicated region
        $region17: #{se_block2_forward.2} parent=11 // pred_check
          %p160 = pneg %p79
        $region18: #{se_block2_forward.2} parent=11 // pred_check_branch
          %162 = sbr.rel (%p160) target = $region20
        $region19: #{se_block2_forward.2} parent=11 // pred_region
          _
        $region20: #{se_block2_forward.2} parent=11 // pred_fallthru
          _
        // Predicated region
        $region21: #{se_block2_forward.2} parent=11 // pred_check
          %p163 = pneg %p100
        $region22: #{se_block2_forward.2} parent=11 // pred_check_branch
          %165 = sbr.rel (%p163) target = $region24
        $region23: #{se_block2_forward.2} parent=11 // pred_region
          _
        $region24: #{se_block2_forward.2} parent=11 // pred_fallthru
          _
        // Predicated region
        $region25: #{se_block2_forward.2} parent=11 // pred_check
          %p166 = pneg %p121
        $region26: #{se_block2_forward.2} parent=11 // pred_check_branch
          %168 = sbr.rel (%p166) target = $region28
        $region27: #{se_block2_forward.2} parent=11 // pred_region
          _
        $region28: #{se_block2_forward.2} parent=11 // pred_fallthru
          _
      $region12: #{se_block2_forward.2} parent=5 // pred_fallthru
        _
      %p169 = scmp.lt.s32.totalorder %s11, 4
      // Predicated region
      $region29: #{se_block2_forward.2} parent=5 // pred_check
        %p170 = pneg %p169
      $region30: #{se_block2_forward.2} parent=5 // pred_check_branch
        %172 = sbr.rel (%p170) target = $region32
      $region31: #{se_block2_forward.2} parent=5 // pred_region
        // Predicated region
        $region33: #{se_block2_forward.2} parent=31 // pred_check
          %p173 = pneg %p31
        $region34: #{se_block2_forward.2} parent=31 // pred_check_branch
          %175 = sbr.rel (%p173) target = $region36
        $region35: #{se_block2_forward.2} parent=31 // pred_region
          %s176 = sand.u32 %s21, 1
          %s177 = sand.u32 %s21, 1
          %s178 = smul.addr %s177, 32
          %s179 = scalar_lea.vmem [#allocation3], %s178
          %s180 = smul.u32 2, %s11
          %s181 = smul.addr %s180, 8
          %s182 = scalar_lea.vmem %s0, %s181
          // Predicated region
          $region37: #{se_block2_forward.2} parent=35 // pred_check
            _
          $region38: #{se_block2_forward.2} parent=35 // pred_check_branch
            %184 = sbr.rel (0) target = $region40
          $region39: #{se_block2_forward.2} parent=35 // pred_region
            // Predicated region
            $region41: #{se_block2_forward.2} parent=39 // pred_check
              _
            $region42: #{se_block2_forward.2} parent=39 // pred_check_branch
              %186 = sbr.rel (0) target = $region44
            $region43: #{se_block2_forward.2} parent=39 // pred_region
              // Predicated region
              $region56: #{se_block2_forward.2} parent=43 // pred_check
                _
              $region57: #{se_block2_forward.2} parent=43 // pred_check_branch
                %208 = sbr.rel (0) target = $region59
              $region58: #{se_block2_forward.2} parent=43 // pred_region
                loop: start=0, step=1, limit=1
                $region60: #{se_block2_forward.2} parent=58 // loop_pre_header
                  _
                $region61: #{se_block2_forward.2} parent=58 // loop_header
                  %s210 = sphi 0, %s214
                  %p211 = scmp.ge.s32.totalorder %s210, 1
                  %s215 = sphi %s182, %s182
                  %s216 = sphi %s179, %s179
                $region62: #{se_block2_forward.2} parent=58 // loop_header_branch
                  %213 = sbr.rel (%p211) target = $region66
                $region63: #{se_block2_forward.2} parent=58 // loop_body
                  %v217 = vld [vmem:[%s215] sm:$0xff]
                  %218 = vst [vmem:[%s216] sm:$0xff] %v217
                  %v219 = vld [vmem:[%s215 + $0x8] sm:$0xff]
                  %220 = vst [vmem:[%s216 + $0x8] sm:$0xff] %v219
                  %v221 = vld [vmem:[%s215 + $0x40] sm:$0xff]
                  %222 = vst [vmem:[%s216 + $0x10] sm:$0xff] %v221
                  %v223 = vld [vmem:[%s215 + $0x48] sm:$0xff]
                  %224 = vst [vmem:[%s216 + $0x18] sm:$0xff] %v223
                $region64: #{se_block2_forward.2} parent=58 // loop_footer
                  %s214 = sadd.s32 1, %s210
                $region65: #{se_block2_forward.2} parent=58 // loop_footer_branch
                  %209 = sbr.rel target = $region61
                $region66: #{se_block2_forward.2} parent=58 // loop_exit
                  _
              $region59: #{se_block2_forward.2} parent=43 // pred_fallthru
                _
              // Predicated region
              $region67: #{se_block2_forward.2} parent=43 // pred_check
                _
              $region68: #{se_block2_forward.2} parent=43 // pred_check_branch
                %226 = sbr.rel target = $region70
              $region69: #{se_block2_forward.2} parent=43 // pred_region
                _
              $region70: #{se_block2_forward.2} parent=43 // pred_fallthru
                _
            $region44: #{se_block2_forward.2} parent=39 // pred_fallthru
              _
            // Predicated region
            $region45: #{se_block2_forward.2} parent=39 // pred_check
              _
            $region46: #{se_block2_forward.2} parent=39 // pred_check_branch
              %188 = sbr.rel target = $region48
            $region47: #{se_block2_forward.2} parent=39 // pred_region
              %s190 = ssub.s32 256, 1
              loop: start=0, step=1, limit=1
              $region49: #{se_block2_forward.2} parent=47 // loop_pre_header
                _
              $region50: #{se_block2_forward.2} parent=47 // loop_header
                %s192 = sphi 0, %s196
                %p193 = scmp.ge.s32.totalorder %s192, 1
                %s197 = sphi %s182, %s182
                %s198 = sphi %s179, %s179
              $region51: #{se_block2_forward.2} parent=47 // loop_header_branch
                %195 = sbr.rel (%p193) target = $region55
              $region52: #{se_block2_forward.2} parent=47 // loop_body
                %v199 = vld [vmem:[%s197] sm:%s190]
                %200 = vst [vmem:[%s198] sm:%s190] %v199
                %v201 = vld [vmem:[%s197 + $0x8] sm:%s190]
                %202 = vst [vmem:[%s198 + $0x8] sm:%s190] %v201
                %v203 = vld [vmem:[%s197 + $0x40] sm:%s190]
                %204 = vst [vmem:[%s198 + $0x10] sm:%s190] %v203
                %v205 = vld [vmem:[%s197 + $0x48] sm:%s190]
                %206 = vst [vmem:[%s198 + $0x18] sm:%s190] %v205
              $region53: #{se_block2_forward.2} parent=47 // loop_footer
                %s196 = sadd.s32 1, %s192
              $region54: #{se_block2_forward.2} parent=47 // loop_footer_branch
                %191 = sbr.rel target = $region50
              $region55: #{se_block2_forward.2} parent=47 // loop_exit
                _
            $region48: #{se_block2_forward.2} parent=39 // pred_fallthru
              _
          $region40: #{se_block2_forward.2} parent=35 // pred_fallthru
            _
          %227 = vnop
        $region36: #{se_block2_forward.2} parent=31 // pred_fallthru
          _
      $region32: #{se_block2_forward.2} parent=5 // pred_fallthru
        _
      %p228 = scmp.le.s32.totalorder 1, %s11
      %p229 = scmp.lt.s32.totalorder %s11, 5
      %p230 = pnand %p228, %p229
      %p231 = pneg %p230
      // Predicated region
      $region71: #{se_block2_forward.2} parent=5 // pred_check
        _
      $region72: #{se_block2_forward.2} parent=5 // pred_check_branch
        %233 = sbr.rel (%p230) target = $region74
      $region73: #{se_block2_forward.2} parent=5 // pred_region
        %s234 = ssub.s32 %s11, 1
        %s235 = sand.u32 %s24, 1
        %s236 = sand.u32 %s24, 1
        %s237 = smul.addr %s236, 32
        %s238 = scalar_lea.vmem [#allocation3], %s237
        // Predicated region
        $region75: #{se_block2_forward.2} parent=73 // pred_check
          %p239 = pneg %p37
        $region76: #{se_block2_forward.2} parent=73 // pred_check_branch
          %241 = sbr.rel (%p239) target = $region78
        $region77: #{se_block2_forward.2} parent=73 // pred_region
          _
        $region78: #{se_block2_forward.2} parent=73 // pred_fallthru
          _
        %s242 = sand.u32 %s24, 1
        %s243 = sand.u32 %s24, 1
        %s244 = smul.addr %s243, 32
        %s245 = scalar_lea.vmem [#allocation3], %s244
        %p246 = pneg %p37
        %p247 = pneg %p34
        %p248 = pneg %p58
        %p249 = pneg %p55
        %p250 = pneg %p79
        %p251 = pneg %p76
        %p252 = pneg %p100
        %p253 = pneg %p97
        %p254 = pneg %p121
        %p255 = pneg %p118
        %p256 = pneg %p142
        %p257 = pneg %p139
        %s258 = smul.u32 2, %s16
        %p259 = scmp.eq.s32.totalorder %s16, 0
        // Predicated region
        $region79: #{se_block2_forward.2} parent=73 // pred_check
          %p260 = pneg %p259
        $region80: #{se_block2_forward.2} parent=73 // pred_check_branch
          %262 = sbr.rel (%p260) target = $region82
        $region81: #{se_block2_forward.2} parent=73 // pred_region
          %vm263 = vcmask 254976
          %264 = vst.msk [vmem:[#allocation2] sm:$0x3] %vm263, 0.0
        $region82: #{se_block2_forward.2} parent=73 // pred_fallthru
          _
        %v265 = vld [vmem:[#allocation2] sm:$0x3]
        %v266 = vld [vmem:[%s238] sm:$0xff]
        %v267 = vld [vmem:[%s238 + $0x8] sm:$0xff]
        %v268 = vld [vmem:[%s238 + $0x10] sm:$0xff]
        %v269 = vld [vmem:[%s238 + $0x18] sm:$0xff]
        %vm270 = vcmask 261120
        %v271 = vsel %vm270, %v266, 0.0
        %v272 = vsel %vm270, %v267, 0.0
        %v273 = vadd.f32 %v271, %v272
        %v274 = vrot.slane %v273, 4
        %v275 = vadd.f32 %v273, %v274
        %v276 = vrot.slane %v275, 2
        %v277 = vadd.f32 %v275, %v276
        %v278 = vrot.slane %v277, 1
        %v279 = vadd.f32 %v277, %v278
        %v280 = vsel %vm270, %v268, 0.0
        %v281 = vsel %vm270, %v269, 0.0
        %v282 = vadd.f32 %v280, %v281
        %v283 = vrot.slane %v282, 4
        %v284 = vadd.f32 %v282, %v283
        %v285 = vrot.slane %v284, 2
        %v286 = vadd.f32 %v284, %v285
        %v287 = vrot.slane %v286, 1
        %v288 = vadd.f32 %v286, %v287
        %vm291 = vcmask 1041409
        %v292 = vsel %vm291, %v288, %v279
        %v294 = vadd.f32 %v265, %v292
        %vm295 = vcmask 254976
        %296 = vst.msk [vmem:[#allocation2] sm:$0x3] %vm295, %v294
        %p297 = scmp.eq.s32.totalorder %s16, 3
        // Predicated region
        $region83: #{se_block2_forward.2} parent=73 // pred_check
          %p298 = pneg %p297
        $region84: #{se_block2_forward.2} parent=73 // pred_check_branch
          %300 = sbr.rel (%p298) target = $region86
        $region85: #{se_block2_forward.2} parent=73 // pred_region
          %v301 = vld [vmem:[#allocation2] sm:$0x3]
          %v302 = vmul.f32 %v301, 0.015625
          %v303 = vld [vmem:[%s1] sm:$0xff]
          %v304 = vld [vmem:[%s1 + $0x8] sm:$0xff]
          %v305 = vld [vmem:[%s1 + $0x10] sm:$0xff]
          %v306 = vld [vmem:[%s1 + $0x18] sm:$0xff]
          %v307 = vld [vmem:[%s2] sm:$0x1]
          %v309 = vlaneseq
          %v310 = vshrl.u32 %v309, 7
          %v311 = vsub.s32 0, %v310
          %v312 = vrot.slane %v307, %v311
          %v315 = vsel %vm270, %v302, 0
          %317 = vmatprep.subr.mxu0 0.0
          %318 = vmatpush1.msra.mxu0 0.0
          %319 = vmatprep.subr.mxu0 0.0
          %320 = vmatpush1.msra.mxu0 0.0
          %321 = vmatprep.subr.mxu0 0.0
          %322 = vmatpush1.msra.mxu0 0.0
          %323 = vmatprep.subr.mxu0 0.0
          %324 = vmatpush1.msra.mxu0 0.0
          %325 = vmatprep.subr.mxu0 0.0
          %326 = vmatpush1.msra.mxu0 0.0
          %327 = vmatprep.subr.mxu0 0.0
          %328 = vmatpush1.msra.mxu0 0.0
          %329 = vmatprep.subr.mxu0 0.0
          %330 = vmatpush1.msra.mxu0 0.0
          %331 = vmatprep.subr.mxu0 0.0
          %332 = vmatpush1.msra.mxu0 0.0
          %333 = vmatprep.subr.mxu0 0.0
          %334 = vmatpush1.msra.mxu0 0.0
          %335 = vmatprep.subr.mxu0 0.0
          %336 = vmatpush1.msra.mxu0 0.0
          %337 = vmatprep.subr.mxu0 0.0
          %338 = vmatpush1.msra.mxu0 0.0
          %339 = vmatprep.subr.mxu0 0.0
          %340 = vmatpush1.msra.mxu0 0.0
          %341 = vmatprep.subr.mxu0 0.0
          %342 = vmatpush1.msra.mxu0 %v306
          %343 = vmatprep.subr.mxu0 0.0
          %344 = vmatpush1.msra.mxu0 %v305
          %345 = vmatprep.subr.mxu0 0.0
          %346 = vmatpush1.msra.mxu0 %v304
          %347 = vmatprep.subr.mxu0 0.0
          %348 = vmatpush1.msra.mxu0 %v303
          %349 = vmatprep.subr.mxu0 0.0
          %350 = vmatpush2.msra.mxu0 0.0
          %351 = vmatprep.subr.mxu0 0.0
          %352 = vmatpush2.msra.mxu0 0.0
          %353 = vmatprep.subr.mxu0 0.0
          %354 = vmatpush2.msra.mxu0 0.0
          %355 = vmatprep.subr.mxu0 0.0
          %356 = vmatpush2.msra.mxu0 0.0
          %357 = vmatprep.subr.mxu0 0.0
          %358 = vmatpush2.msra.mxu0 0.0
          %359 = vmatprep.subr.mxu0 0.0
          %360 = vmatpush2.msra.mxu0 0.0
          %361 = vmatprep.subr.mxu0 0.0
          %362 = vmatpush2.msra.mxu0 0.0
          %363 = vmatprep.subr.mxu0 0.0
          %364 = vmatpush2.msra.mxu0 0.0
          %365 = vmatprep.subr.mxu0 0.0
          %366 = vmatpush2.msra.mxu0 0.0
          %367 = vmatprep.subr.mxu0 0.0
          %368 = vmatpush2.msra.mxu0 0.0
          %369 = vmatprep.subr.mxu0 0.0
          %370 = vmatpush2.msra.mxu0 0.0
          %371 = vmatprep.subr.mxu0 0.0
          %372 = vmatpush2.msra.mxu0 0.0
          %373 = vmatprep.subr.mxu0 0.0
          %374 = vmatpush2.msra.mxu0 0.0
          %375 = vmatprep.subr.mxu0 0.0
          %376 = vmatpush2.msra.mxu0 0.0
          %377 = vmatprep.subr.mxu0 0.0
          %378 = vmatpush2.msra.mxu0 0.0
          %379 = vmatprep.subr.mxu0 0.0
          %380 = vmatpush2.msra.mxu0 0.0
          %381 = vmatprep.mubr.f32.mxu0 0.0
          %382 = vmatmul.mubr.f32.gmra.mxu0 %v315
          %v383 = vpop.f32.mrf.mxu0
          %v384 = vadd.f32 %v312, %v383
          %v385 = vpop.f32.mrf.mxu0
          %386 = vdwg.mxu0
          %v387 = vmax.f32 %v384, 0.0
          %v388 = vld [vmem:[%s3] sm:$0x3]
          %v389 = vld [vmem:[%s4] sm:$0x1]
          %v391 = vlaneseq
          %v392 = vshrl.u32 %v391, 7
          %v393 = vsub.s32 0, %v392
          %v394 = vrot.slane %v389, %v393
          %vm396 = vcmask 15360
          %v398 = vsel %vm396, %v387, 0
          %vm400 = vcmask 1041408
          %v402 = vsel %vm400, %v388, 0
          %404 = vmatprep.subr.mxu0 0.0
          %405 = vmatpush1.msra.mxu0 0.0
          %406 = vmatprep.subr.mxu0 0.0
          %407 = vmatpush1.msra.mxu0 0.0
          %408 = vmatprep.subr.mxu0 0.0
          %409 = vmatpush1.msra.mxu0 0.0
          %410 = vmatprep.subr.mxu0 0.0
          %411 = vmatpush1.msra.mxu0 0.0
          %412 = vmatprep.subr.mxu0 0.0
          %413 = vmatpush1.msra.mxu0 0.0
          %414 = vmatprep.subr.mxu0 0.0
          %415 = vmatpush1.msra.mxu0 0.0
          %416 = vmatprep.subr.mxu0 0.0
          %417 = vmatpush1.msra.mxu0 0.0
          %418 = vmatprep.subr.mxu0 0.0
          %419 = vmatpush1.msra.mxu0 0.0
          %420 = vmatprep.subr.mxu0 0.0
          %421 = vmatpush1.msra.mxu0 0.0
          %422 = vmatprep.subr.mxu0 0.0
          %423 = vmatpush1.msra.mxu0 0.0
          %424 = vmatprep.subr.mxu0 0.0
          %425 = vmatpush1.msra.mxu0 0.0
          %426 = vmatprep.subr.mxu0 0.0
          %427 = vmatpush1.msra.mxu0 0.0
          %428 = vmatprep.subr.mxu0 0.0
          %429 = vmatpush1.msra.mxu0 0.0
          %430 = vmatprep.subr.mxu0 0.0
          %431 = vmatpush1.msra.mxu0 0.0
          %432 = vmatprep.subr.mxu0 0.0
          %433 = vmatpush1.msra.mxu0 0.0
          %434 = vmatprep.subr.mxu0 0.0
          %435 = vmatpush1.msra.mxu0 %v402
          %436 = vmatprep.subr.mxu0 0.0
          %437 = vmatpush2.msra.mxu0 0.0
          %438 = vmatprep.subr.mxu0 0.0
          %439 = vmatpush2.msra.mxu0 0.0
          %440 = vmatprep.subr.mxu0 0.0
          %441 = vmatpush2.msra.mxu0 0.0
          %442 = vmatprep.subr.mxu0 0.0
          %443 = vmatpush2.msra.mxu0 0.0
          %444 = vmatprep.subr.mxu0 0.0
          %445 = vmatpush2.msra.mxu0 0.0
          %446 = vmatprep.subr.mxu0 0.0
          %447 = vmatpush2.msra.mxu0 0.0
          %448 = vmatprep.subr.mxu0 0.0
          %449 = vmatpush2.msra.mxu0 0.0
          %450 = vmatprep.subr.mxu0 0.0
          %451 = vmatpush2.msra.mxu0 0.0
          %452 = vmatprep.subr.mxu0 0.0
          %453 = vmatpush2.msra.mxu0 0.0
          %454 = vmatprep.subr.mxu0 0.0
          %455 = vmatpush2.msra.mxu0 0.0
          %456 = vmatprep.subr.mxu0 0.0
          %457 = vmatpush2.msra.mxu0 0.0
          %458 = vmatprep.subr.mxu0 0.0
          %459 = vmatpush2.msra.mxu0 0.0
          %460 = vmatprep.subr.mxu0 0.0
          %461 = vmatpush2.msra.mxu0 0.0
          %462 = vmatprep.subr.mxu0 0.0
          %463 = vmatpush2.msra.mxu0 0.0
          %464 = vmatprep.subr.mxu0 0.0
          %465 = vmatpush2.msra.mxu0 0.0
          %466 = vmatprep.subr.mxu0 0.0
          %467 = vmatpush2.msra.mxu0 0.0
          %468 = vmatprep.mubr.f32.mxu0 0.0
          %469 = vmatmul.mubr.f32.gmra.mxu0 %v398
          %v470 = vpop.f32.mrf.mxu0
          %v471 = vadd.f32 %v394, %v470
          %v472 = vpop.f32.mrf.mxu0
          %473 = vdwg.mxu0
          %v474 = vxor.u32 %v471, 2147483648
          %v475 = vmul.f32 %v474, 1.442695
          %v476 = vpow.pop %v475
          %v477 = vadd.f32 %v476, 1.0
          %v478 = vrcp.pop %v477
          %v479 = vmul.f32 1.0, %v478
          %v480 = vsel %vm295, %v479, 0.0
          %v481 = vrot.slane %v480, 4
          %v482 = vadd.f32 %v480, %v481
          %v483 = vrot.slane %v482, 2
          %v484 = vadd.f32 %v482, %v483
          %v485 = vrot.slane %v484, 1
          %v486 = vadd.f32 %v484, %v485
          %v487 = vmul.f32 %v486, 0.5
          %vm488 = vcmask 253952
          %489 = vst.msk [vmem:[%s5] sm:$0x1] %vm488, %v487
        $region86: #{se_block2_forward.2} parent=73 // pred_fallthru
          _
        // Predicated region
        $region87: #{se_block2_forward.2} parent=73 // pred_check
          %p490 = pneg %p139
        $region88: #{se_block2_forward.2} parent=73 // pred_check_branch
          %492 = sbr.rel (%p490) target = $region90
        $region89: #{se_block2_forward.2} parent=73 // pred_region
          _
        $region90: #{se_block2_forward.2} parent=73 // pred_fallthru
          _
        // Predicated region
        $region91: #{se_block2_forward.2} parent=73 // pred_check
          %p493 = pneg %p139
        $region92: #{se_block2_forward.2} parent=73 // pred_check_branch
          %495 = sbr.rel (%p493) target = $region94
        $region93: #{se_block2_forward.2} parent=73 // pred_region
          _
        $region94: #{se_block2_forward.2} parent=73 // pred_fallthru
          _
      $region74: #{se_block2_forward.2} parent=5 // pred_fallthru
        _
      %p496 = scmp.le.s32.totalorder 2, %s11
      // Predicated region
      $region95: #{se_block2_forward.2} parent=5 // pred_check
        %p497 = pneg %p496
      $region96: #{se_block2_forward.2} parent=5 // pred_check_branch
        %499 = sbr.rel (%p497) target = $region98
      $region97: #{se_block2_forward.2} parent=5 // pred_region
        %s500 = ssub.s32 %s11, 2
      $region98: #{se_block2_forward.2} parent=5 // pred_fallthru
        _
    $region6: #{se_block2_forward.2} parent=1 // loop_footer
      %s15 = sadd.s32 1, %s11
    $region7: #{se_block2_forward.2} parent=1 // loop_footer_branch
      %10 = sbr.rel target = $region3
    $region8: #{se_block2_forward.2} parent=1 // loop_exit
      _

// kernel: se_block2_forward.3
$region0: #{se_block2_forward.3}
  #allocation0 [shape = 'u32[]', space=smem, size = 0x4, offset = 0x4, fixed_abs, tag = 'smem constant byte address 0x4 - core index']
  #allocation1 [shape = 'u32[144,128]{1,0:T(1,128)}', space=vmem, size = 0x12000, scoped, tag = 'internal scratch']
  #allocation5 [shape = 's32[]', space=sflag, size = 0x4, offset = 0, fixed_abs, tag = 'sflag constant byte address 0x0 - dummy sync flag']
  %s0 = inlined_call_operand.vmem [shape: f32[2,64,32], index: 0, kind: input, shape index: {}]
  %s1 = inlined_call_operand.vmem [shape: f32[64,32], index: 1, kind: input, shape index: {}, may-alias: {1,8}]
  %s2 = inlined_call_operand.vmem [shape: f32[1,32], index: 2, kind: input, shape index: {}]
  %s3 = inlined_call_operand.vmem [shape: bf16[32,128], index: 3, kind: input, shape index: {}]
  %s4 = inlined_call_operand.vmem [shape: f32[1,128], index: 4, kind: input, shape index: {}]
  %s5 = inlined_call_operand.vmem [shape: bf16[128,32], index: 5, kind: input, shape index: {}]
  %s6 = inlined_call_operand.vmem [shape: f32[1,32], index: 6, kind: input, shape index: {}]
  %s7 = inlined_call_operand.hbm [shape: f32[2,64,32], index: 7, kind: output, shape index: {0}]
  %s8 = inlined_call_operand.vmem [shape: f32[64,32], index: 8, kind: output, shape index: {1}, may-alias: {1,8}]
  %9 = xla_tuple %s7, %s8
  %s10 = sld [smem:[#allocation0]]
  $region107: #{se_block2_forward.3} parent=0
    _
  %s12 = ssub.s32 1, %s10
  %s13 = scalar_select 0, %s12, %s10
  $region1: #{se_block2_forward.3} parent=0
    #allocation2 [shape = 'u8[32768]{0}', space=vmem, size = 0x8000, scoped, tag = 'input window, operand 0']
    #allocation3 [shape = 'u8[32768]{0}', space=vmem, size = 0x8000, scoped, tag = 'output window, operand 0']
    #allocation4 [shape = 's32[2]{0}', space=sflag, size = 0x8, scoped, tag = 'scoped memory for se_block2_forward.3']
    %14 = vsyncpa [#allocation4], 0
    %s15 = scalar_lea.sflag [#allocation4], 1
    %16 = vsyncpa %s15, 0
    loop: start=0, step=1, limit=6
    $region2: #{se_block2_forward.3} parent=1 // loop_pre_header
      _
    $region3: #{se_block2_forward.3} parent=1 // loop_header
      %s18 = sphi 0, %s22
      %p19 = scmp.ge.s32.totalorder %s18, 6
      %s28 = sphi 0, %s30
      %s31 = sphi 0, %s28
      %s32 = sphi 0, %s31
      %s48 = sphi 0, %s32
      %s54 = sphi 0, %s56
      %s57 = sphi 0, %s54
      %s58 = sphi 0, %s57
      %s74 = sphi 0, %s58
      %s78 = sphi 0, %s78
      %s80 = sphi 0, %s78
      %s81 = sphi 0, %s80
      %s95 = sphi 0, %s81
      %s99 = sphi 0, %s99
      %s101 = sphi 0, %s99
      %s102 = sphi 0, %s101
      %s116 = sphi 0, %s102
      %s120 = sphi 0, %s120
      %s122 = sphi 0, %s120
      %s123 = sphi 0, %s122
      %s137 = sphi 0, %s123
      %s141 = sphi 0, %s141
      %s143 = sphi 0, %s141
      %s144 = sphi 0, %s143
      %s158 = sphi 0, %s144
      %s162 = sphi 0, %s162
      %s164 = sphi 0, %s162
      %s165 = sphi 0, %s164
      %s179 = sphi 0, %s165
      %s185 = sphi 0, %s187
      %s188 = sphi 0, %s185
      %s189 = sphi 0, %s188
      %s205 = sphi 0, %s189
      %s211 = sphi 0, %s213
      %s214 = sphi 0, %s211
      %s215 = sphi 0, %s214
      %s231 = sphi 0, %s215
    $region4: #{se_block2_forward.3} parent=1 // loop_header_branch
      %21 = sbr.rel (%p19) target = $region8
    $region5: #{se_block2_forward.3} parent=1 // loop_body
      %s23 = ssub.s32 %s18, 1
      %s24 = ssub.s32 %s18, 2
      %s25 = sadd.s32 %s18, 1
      %s26 = ssub.s32 %s18, %s25
      %p27 = scmp.eq.s32.totalorder %s26, 0
      %s29 = sadd.s32 %s28, 1
      %s30 = scalar_select %p27, %s28, %s29
      %p33 = pneg %p27
      %p34 = scmp.eq.s32.totalorder %s18, 3
      %p35 = por %p33, %p34
      %p36 = scmp.ne.s32.totalorder %s28, %s31
      %p37 = scmp.eq.s32.totalorder %s18, 0
      %p38 = por %p36, %p37
      %p39 = scmp.ne.s32.totalorder %s28, %s31
      %p40 = scmp.eq.s32.totalorder %s23, 3
      %p41 = por %p39, %p40
      %p42 = scmp.ne.s32.totalorder %s31, %s32
      %p43 = scmp.eq.s32.totalorder %s23, 0
      %p44 = por %p42, %p43
      %p45 = scmp.ne.s32.totalorder %s31, %s32
      %p46 = scmp.eq.s32.totalorder %s24, 3
      %p47 = por %p45, %p46
      %p49 = scmp.ne.s32.totalorder %s32, %s48
      %p50 = scmp.eq.s32.totalorder %s24, 0
      %p51 = por %p49, %p50
      %s52 = ssub.s32 %s18, %s25
      %p53 = scmp.eq.s32.totalorder %s52, 0
      %s55 = sadd.s32 %s54, 1
      %s56 = scalar_select %p53, %s54, %s55
      %p59 = pneg %p53
      %p60 = scmp.eq.s32.totalorder %s18, 3
      %p61 = por %p59, %p60
      %p62 = scmp.ne.s32.totalorder %s54, %s57
      %p63 = scmp.eq.s32.totalorder %s18, 0
      %p64 = por %p62, %p63
      %p65 = scmp.ne.s32.totalorder %s54, %s57
      %p66 = scmp.eq.s32.totalorder %s23, 3
      %p67 = por %p65, %p66
      %p68 = scmp.ne.s32.totalorder %s57, %s58
      %p69 = scmp.eq.s32.totalorder %s23, 0
      %p70 = por %p68, %p69
      %p71 = scmp.ne.s32.totalorder %s57, %s58
      %p72 = scmp.eq.s32.totalorder %s24, 3
      %p73 = por %p71, %p72
      %p75 = scmp.ne.s32.totalorder %s58, %s74
      %p76 = scmp.eq.s32.totalorder %s24, 0
      %p77 = por %p75, %p76
      %s79 = sadd.s32 %s78, 1
      %p82 = scmp.eq.s32.totalorder %s18, 3
      %p83 = scmp.ne.s32.totalorder %s78, %s80
      %p84 = scmp.eq.s32.totalorder %s18, 0
      %p85 = por %p83, %p84
      %p86 = scmp.ne.s32.totalorder %s78, %s80
      %p87 = scmp.eq.s32.totalorder %s23, 3
      %p88 = por %p86, %p87
      %p89 = scmp.ne.s32.totalorder %s80, %s81
      %p90 = scmp.eq.s32.totalorder %s23, 0
      %p91 = por %p89, %p90
      %p92 = scmp.ne.s32.totalorder %s80, %s81
      %p93 = scmp.eq.s32.totalorder %s24, 3
      %p94 = por %p92, %p93
      %p96 = scmp.ne.s32.totalorder %s81, %s95
      %p97 = scmp.eq.s32.totalorder %s24, 0
      %p98 = por %p96, %p97
      %s100 = sadd.s32 %s99, 1
      %p103 = scmp.eq.s32.totalorder %s18, 3
      %p104 = scmp.ne.s32.totalorder %s99, %s101
      %p105 = scmp.eq.s32.totalorder %s18, 0
      %p106 = por %p104, %p105
      %p107 = scmp.ne.s32.totalorder %s99, %s101
      %p108 = scmp.eq.s32.totalorder %s23, 3
      %p109 = por %p107, %p108
      %p110 = scmp.ne.s32.totalorder %s101, %s102
      %p111 = scmp.eq.s32.totalorder %s23, 0
      %p112 = por %p110, %p111
      %p113 = scmp.ne.s32.totalorder %s101, %s102
      %p114 = scmp.eq.s32.totalorder %s24, 3
      %p115 = por %p113, %p114
      %p117 = scmp.ne.s32.totalorder %s102, %s116
      %p118 = scmp.eq.s32.totalorder %s24, 0
      %p119 = por %p117, %p118
      %s121 = sadd.s32 %s120, 1
      %p124 = scmp.eq.s32.totalorder %s18, 3
      %p125 = scmp.ne.s32.totalorder %s120, %s122
      %p126 = scmp.eq.s32.totalorder %s18, 0
      %p127 = por %p125, %p126
      %p128 = scmp.ne.s32.totalorder %s120, %s122
      %p129 = scmp.eq.s32.totalorder %s23, 3
      %p130 = por %p128, %p129
      %p131 = scmp.ne.s32.totalorder %s122, %s123
      %p132 = scmp.eq.s32.totalorder %s23, 0
      %p133 = por %p131, %p132
      %p134 = scmp.ne.s32.totalorder %s122, %s123
      %p135 = scmp.eq.s32.totalorder %s24, 3
      %p136 = por %p134, %p135
      %p138 = scmp.ne.s32.totalorder %s123, %s137
      %p139 = scmp.eq.s32.totalorder %s24, 0
      %p140 = por %p138, %p139
      %s142 = sadd.s32 %s141, 1
      %p145 = scmp.eq.s32.totalorder %s18, 3
      %p146 = scmp.ne.s32.totalorder %s141, %s143
      %p147 = scmp.eq.s32.totalorder %s18, 0
      %p148 = por %p146, %p147
      %p149 = scmp.ne.s32.totalorder %s141, %s143
      %p150 = scmp.eq.s32.totalorder %s23, 3
      %p151 = por %p149, %p150
      %p152 = scmp.ne.s32.totalorder %s143, %s144
      %p153 = scmp.eq.s32.totalorder %s23, 0
      %p154 = por %p152, %p153
      %p155 = scmp.ne.s32.totalorder %s143, %s144
      %p156 = scmp.eq.s32.totalorder %s24, 3
      %p157 = por %p155, %p156
      %p159 = scmp.ne.s32.totalorder %s144, %s158
      %p160 = scmp.eq.s32.totalorder %s24, 0
      %p161 = por %p159, %p160
      %s163 = sadd.s32 %s162, 1
      %p166 = scmp.eq.s32.totalorder %s18, 3
      %p167 = scmp.ne.s32.totalorder %s162, %s164
      %p168 = scmp.eq.s32.totalorder %s18, 0
      %p169 = por %p167, %p168
      %p170 = scmp.ne.s32.totalorder %s162, %s164
      %p171 = scmp.eq.s32.totalorder %s23, 3
      %p172 = por %p170, %p171
      %p173 = scmp.ne.s32.totalorder %s164, %s165
      %p174 = scmp.eq.s32.totalorder %s23, 0
      %p175 = por %p173, %p174
      %p176 = scmp.ne.s32.totalorder %s164, %s165
      %p177 = scmp.eq.s32.totalorder %s24, 3
      %p178 = por %p176, %p177
      %p180 = scmp.ne.s32.totalorder %s165, %s179
      %p181 = scmp.eq.s32.totalorder %s24, 0
      %p182 = por %p180, %p181
      %s183 = ssub.s32 %s18, %s25
      %p184 = scmp.eq.s32.totalorder %s183, 0
      %s186 = sadd.s32 %s185, 1
      %s187 = scalar_select %p184, %s185, %s186
      %p190 = pneg %p184
      %p191 = scmp.eq.s32.totalorder %s18, 3
      %p192 = por %p190, %p191
      %p193 = scmp.ne.s32.totalorder %s185, %s188
      %p194 = scmp.eq.s32.totalorder %s18, 0
      %p195 = por %p193, %p194
      %p196 = scmp.ne.s32.totalorder %s185, %s188
      %p197 = scmp.eq.s32.totalorder %s23, 3
      %p198 = por %p196, %p197
      %p199 = scmp.ne.s32.totalorder %s188, %s189
      %p200 = scmp.eq.s32.totalorder %s23, 0
      %p201 = por %p199, %p200
      %p202 = scmp.ne.s32.totalorder %s188, %s189
      %p203 = scmp.eq.s32.totalorder %s24, 3
      %p204 = por %p202, %p203
      %p206 = scmp.ne.s32.totalorder %s189, %s205
      %p207 = scmp.eq.s32.totalorder %s24, 0
      %p208 = por %p206, %p207
      %s209 = ssub.s32 %s18, %s25
      %p210 = scmp.eq.s32.totalorder %s209, 0
      %s212 = sadd.s32 %s211, 1
      %s213 = scalar_select %p210, %s211, %s212
      %p216 = pneg %p210
      %p217 = scmp.eq.s32.totalorder %s18, 3
      %p218 = por %p216, %p217
      %p219 = scmp.ne.s32.totalorder %s211, %s214
      %p220 = scmp.eq.s32.totalorder %s18, 0
      %p221 = por %p219, %p220
      %p222 = scmp.ne.s32.totalorder %s211, %s214
      %p223 = scmp.eq.s32.totalorder %s23, 3
      %p224 = por %p222, %p223
      %p225 = scmp.ne.s32.totalorder %s214, %s215
      %p226 = scmp.eq.s32.totalorder %s23, 0
      %p227 = por %p225, %p226
      %p228 = scmp.ne.s32.totalorder %s214, %s215
      %p229 = scmp.eq.s32.totalorder %s24, 3
      %p230 = por %p228, %p229
      %p232 = scmp.ne.s32.totalorder %s215, %s231
      %p233 = scmp.eq.s32.totalorder %s24, 0
      %p234 = por %p232, %p233
      %p235 = scmp.le.s32.totalorder 1, %s18
      %p236 = scmp.lt.s32.totalorder %s18, 5
      %p237 = pnand %p235, %p236
      %p238 = pneg %p237
      // Predicated region
      $region9: #{se_block2_forward.3} parent=5 // pred_check
        _
      $region10: #{se_block2_forward.3} parent=5 // pred_check_branch
        %240 = sbr.rel (%p237) target = $region12
      $region11: #{se_block2_forward.3} parent=5 // pred_region
        %s241 = ssub.s32 %s18, 1
        // Predicated region
        $region13: #{se_block2_forward.3} parent=11 // pred_check
          %p242 = pneg %p91
        $region14: #{se_block2_forward.3} parent=11 // pred_check_branch
          %244 = sbr.rel (%p242) target = $region16
        $region15: #{se_block2_forward.3} parent=11 // pred_region
          _
        $region16: #{se_block2_forward.3} parent=11 // pred_fallthru
          _
        // Predicated region
        $region17: #{se_block2_forward.3} parent=11 // pred_check
          %p245 = pneg %p112
        $region18: #{se_block2_forward.3} parent=11 // pred_check_branch
          %247 = sbr.rel (%p245) target = $region20
        $region19: #{se_block2_forward.3} parent=11 // pred_region
          _
        $region20: #{se_block2_forward.3} parent=11 // pred_fallthru
          _
        // Predicated region
        $region21: #{se_block2_forward.3} parent=11 // pred_check
          %p248 = pneg %p133
        $region22: #{se_block2_forward.3} parent=11 // pred_check_branch
          %250 = sbr.rel (%p248) target = $region24
        $region23: #{se_block2_forward.3} parent=11 // pred_region
          _
        $region24: #{se_block2_forward.3} parent=11 // pred_fallthru
          _
        // Predicated region
        $region25: #{se_block2_forward.3} parent=11 // pred_check
          %p251 = pneg %p154
        $region26: #{se_block2_forward.3} parent=11 // pred_check_branch
          %253 = sbr.rel (%p251) target = $region28
        $region27: #{se_block2_forward.3} parent=11 // pred_region
          _
        $region28: #{se_block2_forward.3} parent=11 // pred_fallthru
          _
        // Predicated region
        $region29: #{se_block2_forward.3} parent=11 // pred_check
          %p254 = pneg %p175
        $region30: #{se_block2_forward.3} parent=11 // pred_check_branch
          %256 = sbr.rel (%p254) target = $region32
        $region31: #{se_block2_forward.3} parent=11 // pred_region
          _
        $region32: #{se_block2_forward.3} parent=11 // pred_fallthru
          _
      $region12: #{se_block2_forward.3} parent=5 // pred_fallthru
        _
      %p257 = scmp.lt.s32.totalorder %s18, 4
      // Predicated region
      $region33: #{se_block2_forward.3} parent=5 // pred_check
        %p258 = pneg %p257
      $region34: #{se_block2_forward.3} parent=5 // pred_check_branch
        %260 = sbr.rel (%p258) target = $region36
      $region35: #{se_block2_forward.3} parent=5 // pred_region
        // Predicated region
        $region37: #{se_block2_forward.3} parent=35 // pred_check
          %p261 = pneg %p38
        $region38: #{se_block2_forward.3} parent=35 // pred_check_branch
          %263 = sbr.rel (%p261) target = $region40
        $region39: #{se_block2_forward.3} parent=35 // pred_region
          %s264 = sand.u32 %s28, 1
          %s265 = sand.u32 %s28, 1
          %s266 = smul.addr %s265, 32
          %s267 = scalar_lea.vmem [#allocation2], %s266
          %s268 = smul.u32 2, %s18
          %s269 = smul.addr %s268, 8
          %s270 = scalar_lea.vmem %s0, %s269
          // Predicated region
          $region41: #{se_block2_forward.3} parent=39 // pred_check
            _
          $region42: #{se_block2_forward.3} parent=39 // pred_check_branch
            %272 = sbr.rel (0) target = $region44
          $region43: #{se_block2_forward.3} parent=39 // pred_region
            // Predicated region
            $region45: #{se_block2_forward.3} parent=43 // pred_check
              _
            $region46: #{se_block2_forward.3} parent=43 // pred_check_branch
              %274 = sbr.rel (0) target = $region48
            $region47: #{se_block2_forward.3} parent=43 // pred_region
              // Predicated region
              $region60: #{se_block2_forward.3} parent=47 // pred_check
                _
              $region61: #{se_block2_forward.3} parent=47 // pred_check_branch
                %296 = sbr.rel (0) target = $region63
              $region62: #{se_block2_forward.3} parent=47 // pred_region
                loop: start=0, step=1, limit=1
                $region64: #{se_block2_forward.3} parent=62 // loop_pre_header
                  _
                $region65: #{se_block2_forward.3} parent=62 // loop_header
                  %s298 = sphi 0, %s302
                  %p299 = scmp.ge.s32.totalorder %s298, 1
                  %s303 = sphi %s270, %s270
                  %s304 = sphi %s267, %s267
                $region66: #{se_block2_forward.3} parent=62 // loop_header_branch
                  %301 = sbr.rel (%p299) target = $region70
                $region67: #{se_block2_forward.3} parent=62 // loop_body
                  %v305 = vld [vmem:[%s303] sm:$0xff]
                  %306 = vst [vmem:[%s304] sm:$0xff] %v305
                  %v307 = vld [vmem:[%s303 + $0x8] sm:$0xff]
                  %308 = vst [vmem:[%s304 + $0x8] sm:$0xff] %v307
                  %v309 = vld [vmem:[%s303 + $0x40] sm:$0xff]
                  %310 = vst [vmem:[%s304 + $0x10] sm:$0xff] %v309
                  %v311 = vld [vmem:[%s303 + $0x48] sm:$0xff]
                  %312 = vst [vmem:[%s304 + $0x18] sm:$0xff] %v311
                $region68: #{se_block2_forward.3} parent=62 // loop_footer
                  %s302 = sadd.s32 1, %s298
                $region69: #{se_block2_forward.3} parent=62 // loop_footer_branch
                  %297 = sbr.rel target = $region65
                $region70: #{se_block2_forward.3} parent=62 // loop_exit
                  _
              $region63: #{se_block2_forward.3} parent=47 // pred_fallthru
                _
              // Predicated region
              $region71: #{se_block2_forward.3} parent=47 // pred_check
                _
              $region72: #{se_block2_forward.3} parent=47 // pred_check_branch
                %314 = sbr.rel target = $region74
              $region73: #{se_block2_forward.3} parent=47 // pred_region
                _
              $region74: #{se_block2_forward.3} parent=47 // pred_fallthru
                _
            $region48: #{se_block2_forward.3} parent=43 // pred_fallthru
              _
            // Predicated region
            $region49: #{se_block2_forward.3} parent=43 // pred_check
              _
            $region50: #{se_block2_forward.3} parent=43 // pred_check_branch
              %276 = sbr.rel target = $region52
            $region51: #{se_block2_forward.3} parent=43 // pred_region
              %s278 = ssub.s32 256, 1
              loop: start=0, step=1, limit=1
              $region53: #{se_block2_forward.3} parent=51 // loop_pre_header
                _
              $region54: #{se_block2_forward.3} parent=51 // loop_header
                %s280 = sphi 0, %s284
                %p281 = scmp.ge.s32.totalorder %s280, 1
                %s285 = sphi %s270, %s270
                %s286 = sphi %s267, %s267
              $region55: #{se_block2_forward.3} parent=51 // loop_header_branch
                %283 = sbr.rel (%p281) target = $region59
              $region56: #{se_block2_forward.3} parent=51 // loop_body
                %v287 = vld [vmem:[%s285] sm:%s278]
                %288 = vst [vmem:[%s286] sm:%s278] %v287
                %v289 = vld [vmem:[%s285 + $0x8] sm:%s278]
                %290 = vst [vmem:[%s286 + $0x8] sm:%s278] %v289
                %v291 = vld [vmem:[%s285 + $0x40] sm:%s278]
                %292 = vst [vmem:[%s286 + $0x10] sm:%s278] %v291
                %v293 = vld [vmem:[%s285 + $0x48] sm:%s278]
                %294 = vst [vmem:[%s286 + $0x18] sm:%s278] %v293
              $region57: #{se_block2_forward.3} parent=51 // loop_footer
                %s284 = sadd.s32 1, %s280
              $region58: #{se_block2_forward.3} parent=51 // loop_footer_branch
                %279 = sbr.rel target = $region54
              $region59: #{se_block2_forward.3} parent=51 // loop_exit
                _
            $region52: #{se_block2_forward.3} parent=43 // pred_fallthru
              _
          $region44: #{se_block2_forward.3} parent=39 // pred_fallthru
            _
          %315 = vnop
        $region40: #{se_block2_forward.3} parent=35 // pred_fallthru
          _
        // Predicated region
        $region75: #{se_block2_forward.3} parent=35 // pred_check
          %p316 = pneg %p64
        $region76: #{se_block2_forward.3} parent=35 // pred_check_branch
          %318 = sbr.rel (%p316) target = $region78
        $region77: #{se_block2_forward.3} parent=35 // pred_region
          %s319 = smul.u32 2, %s18
          %p320 = scmp.lt.s32.totalorder %s319, 7
          %s321 = scalar_select %p320, %s319, 7
          %s322 = smul.addr %s321, 8
          %s323 = scalar_lea.vmem %s1, %s322
          %s324 = smul.u32 2, %s18
        $region78: #{se_block2_forward.3} parent=35 // pred_fallthru
          _
      $region36: #{se_block2_forward.3} parent=5 // pred_fallthru
        _
      %p325 = scmp.le.s32.totalorder 1, %s18
      %p326 = scmp.lt.s32.totalorder %s18, 5
      %p327 = pnand %p325, %p326
      %p328 = pneg %p327
      // Predicated region
      $region79: #{se_block2_forward.3} parent=5 // pred_check
        _
      $region80: #{se_block2_forward.3} parent=5 // pred_check_branch
        %330 = sbr.rel (%p327) target = $region82
      $region81: #{se_block2_forward.3} parent=5 // pred_region
        %s331 = ssub.s32 %s18, 1
        %s332 = sand.u32 %s31, 1
        %s333 = sand.u32 %s31, 1
        %s334 = smul.addr %s333, 32
        %s335 = scalar_lea.vmem [#allocation2], %s334
        // Predicated region
        $region83: #{se_block2_forward.3} parent=81 // pred_check
          %p336 = pneg %p44
        $region84: #{se_block2_forward.3} parent=81 // pred_check_branch
          %338 = sbr.rel (%p336) target = $region86
        $region85: #{se_block2_forward.3} parent=81 // pred_region
          _
        $region86: #{se_block2_forward.3} parent=81 // pred_fallthru
          _
        %s339 = sand.u32 %s31, 1
        %s340 = sand.u32 %s31, 1
        %s341 = smul.addr %s340, 32
        %s342 = scalar_lea.vmem [#allocation2], %s341
        %p343 = pneg %p44
        %p344 = pneg %p41
        %s345 = smul.u32 2, %s23
        %p346 = scmp.lt.s32.totalorder %s345, 7
        %s347 = scalar_select %p346, %s345, 7
        %s348 = smul.addr %s347, 8
        %s349 = scalar_lea.vmem %s1, %s348
        %p350 = pneg %p70
        %p351 = pneg %p67
        %p352 = pneg %p91
        %p353 = pneg %p88
        %p354 = pneg %p112
        %p355 = pneg %p109
        %p356 = pneg %p133
        %p357 = pneg %p130
        %p358 = pneg %p154
        %p359 = pneg %p151
        %p360 = pneg %p175
        %p361 = pneg %p172
        %p362 = pneg %p201
        %p363 = pneg %p198
        %s364 = sand.u32 %s188, 1
        %s365 = scalar_lea.sflag [#allocation4], %s364
        %s366 = sand.u32 %s188, 1
        %s367 = smul.addr %s366, 32
        %s368 = scalar_lea.vmem [#allocation3], %s367
        %p369 = pneg %p227
        %p370 = pneg %p224
        %s371 = smul.u32 2, %s23
        %p372 = scmp.lt.s32.totalorder %s371, 7
        %s373 = scalar_select %p372, %s371, 7
        %s374 = smul.addr %s373, 8
        %s375 = scalar_lea.vmem %s8, %s374
        %s376 = smul.u32 2, %s23
        %s377 = smul.u32 2, %s23
        %p378 = scmp.lt.s32.totalorder %s377, 7
        %s379 = scalar_select %p378, %s377, 7
        %s380 = smul.addr %s379, 8
        %s381 = scalar_lea.vmem %s1, %s380
        %s382 = smul.u32 2, %s23
        %s383 = smul.u32 2, %s23
        %s384 = smul.u32 2, %s23
        %p385 = scmp.lt.s32.totalorder %s384, 7
        %s386 = scalar_select %p385, %s384, 7
        %s387 = smul.addr %s386, 8
        %s388 = scalar_lea.vmem %s8, %s387
        %s389 = smul.u32 2, %s23
        %v391 = vld [vmem:[%s335] sm:$0xff]
        %v392 = vld [vmem:[%s335 + $0x8] sm:$0xff]
        %v393 = vld [vmem:[%s335 + $0x10] sm:$0xff]
        %v394 = vld [vmem:[%s335 + $0x18] sm:$0xff]
        %v395 = vld [vmem:[%s2] sm:$0x1]
        %v396 = vpack.c.bf16 %v392, %v391
        %v397 = vpack.c.bf16 %v394, %v393
        %v398 = vld [vmem:[%s3] sm:$0xf]
        %v399 = vld [vmem:[%s3 + $0x4] sm:$0xf]
        %v400 = vld [vmem:[%s3 + $0x8] sm:$0xf]
        %v401 = vld [vmem:[%s3 + $0xc] sm:$0xf]
        %v402 = vld [vmem:[%s4] sm:$0x1]
        %v404 = vlaneseq
        %v405 = vshrl.u32 %v404, 7
        %v406 = vsub.s32 0, %v405
        %v407 = vrot.slane %v402, %v406
        %v413 = vunpack.c.l.b16 %v398
        %v414 = vunpack.c.l.b16 %v399
        %v415 = vunpack.c.l.b16 %v400
        %v416 = vunpack.c.l.b16 %v401
        %v417 = vpack.c.b16 %v414, %v413
        %v418 = vpack.c.b16 %v416, %v415
        %vm421 = vcmask 261120
        %v423 = vsel %vm421, %v396, 0
        %v426 = vsel %vm421, %v397, 0
        %428 = vmatprep.subr.bf16.mxu0 0
        %429 = vmatpush1.bf16.msra.mxu0 0
        %430 = vmatprep.subr.bf16.mxu0 0
        %431 = vmatpush1.bf16.msra.mxu0 0
        %432 = vmatprep.subr.bf16.mxu0 0
        %433 = vmatpush1.bf16.msra.mxu0 0
        %434 = vmatprep.subr.bf16.mxu0 0
        %435 = vmatpush1.bf16.msra.mxu0 0
        %436 = vmatprep.subr.bf16.mxu0 0
        %437 = vmatpush1.bf16.msra.mxu0 0
        %438 = vmatprep.subr.bf16.mxu0 0
        %439 = vmatpush1.bf16.msra.mxu0 0
        %440 = vmatprep.subr.bf16.mxu0 0
        %441 = vmatpush1.bf16.msra.mxu0 %v418
        %442 = vmatprep.subr.bf16.mxu0 0
        %443 = vmatpush1.bf16.msra.mxu0 %v417
        %444 = vmatprep.subr.bf16.mxu0 0
        %445 = vmatpush2.bf16.msra.mxu0 0
        %446 = vmatprep.subr.bf16.mxu0 0
        %447 = vmatpush2.bf16.msra.mxu0 0
        %448 = vmatprep.subr.bf16.mxu0 0
        %449 = vmatpush2.bf16.msra.mxu0 0
        %450 = vmatprep.subr.bf16.mxu0 0
        %451 = vmatpush2.bf16.msra.mxu0 0
        %452 = vmatprep.subr.bf16.mxu0 0
        %453 = vmatpush2.bf16.msra.mxu0 0
        %454 = vmatprep.subr.bf16.mxu0 0
        %455 = vmatpush2.bf16.msra.mxu0 0
        %456 = vmatprep.subr.bf16.mxu0 0
        %457 = vmatpush2.bf16.msra.mxu0 0
        %458 = vmatprep.subr.bf16.mxu0 0
        %459 = vmatpush2.bf16.msra.mxu0 0
        %460 = vmatprep.mubr.bf16.mxu0 0
        %461 = vmatmul.mubr.bf16.gmra.mxu0 %v423
        %v462 = vpop.f32.mrf.mxu0
        %v463 = vadd.f32 %v407, %v462
        %v464 = vpop.f32.mrf.mxu0
        %v465 = vpop.f32.mrf.mxu0
        %v466 = vadd.f32 %v407, %v465
        %v467 = vpop.f32.mrf.mxu0
        %468 = vmatprep.mubr.bf16.mxu0 0
        %469 = vmatmul.mubr.bf16.gmra.mxu0 %v426
        %v470 = vpop.f32.mrf.mxu0
        %v471 = vadd.f32 %v407, %v470
        %v472 = vpop.f32.mrf.mxu0
        %v473 = vpop.f32.mrf.mxu0
        %v474 = vadd.f32 %v407, %v473
        %v475 = vpop.f32.mrf.mxu0
        %476 = vdwg.mxu0
        %v477 = vmax.f32 %v463, 0.0
        %v478 = vmax.f32 %v466, 0.0
        %v479 = vmax.f32 %v471, 0.0
        %v480 = vmax.f32 %v474, 0.0
        %v481 = vpack.c.bf16 %v478, %v477
        %v482 = vpack.c.bf16 %v480, %v479
        %v483 = vld [vmem:[%s5] sm:$0xf]
        %v484 = vld [vmem:[%s5 + $0x4] sm:$0xf]
        %v485 = vld [vmem:[%s5 + $0x8] sm:$0xf]
        %v486 = vld [vmem:[%s5 + $0xc] sm:$0xf]
        %v487 = vld [vmem:[%s5 + $0x10] sm:$0xf]
        %v488 = vld [vmem:[%s5 + $0x14] sm:$0xf]
        %v489 = vld [vmem:[%s5 + $0x18] sm:$0xf]
        %v490 = vld [vmem:[%s5 + $0x1c] sm:$0xf]
        %v491 = vld [vmem:[%s5 + $0x20] sm:$0xf]
        %v492 = vld [vmem:[%s5 + $0x24] sm:$0xf]
        %v493 = vld [vmem:[%s5 + $0x28] sm:$0xf]
        %v494 = vld [vmem:[%s5 + $0x2c] sm:$0xf]
        %v495 = vld [vmem:[%s5 + $0x30] sm:$0xf]
        %v496 = vld [vmem:[%s5 + $0x34] sm:$0xf]
        %v497 = vld [vmem:[%s5 + $0x38] sm:$0xf]
        %v498 = vld [vmem:[%s5 + $0x3c] sm:$0xf]
        %v499 = vld [vmem:[%s6] sm:$0x1]
        %v501 = vlaneseq
        %v502 = vshrl.u32 %v501, 7
        %v503 = vsub.s32 0, %v502
        %v504 = vrot.slane %v499, %v503
        %v522 = vunpack.c.l.b16 %v483
        %v523 = vunpack.c.l.b16 %v484
        %v524 = vunpack.c.l.b16 %v485
        %v525 = vunpack.c.l.b16 %v486
        %v526 = vunpack.c.l.b16 %v487
        %v527 = vunpack.c.l.b16 %v488
        %v528 = vunpack.c.l.b16 %v489
        %v529 = vunpack.c.l.b16 %v490
        %v530 = vunpack.c.l.b16 %v491
        %v531 = vunpack.c.l.b16 %v492
        %v532 = vunpack.c.l.b16 %v493
        %v533 = vunpack.c.l.b16 %v494
        %v534 = vunpack.c.l.b16 %v495
        %v535 = vunpack.c.l.b16 %v496
        %v536 = vunpack.c.l.b16 %v497
        %v537 = vunpack.c.l.b16 %v498
        %v538 = vpack.c.b16 %v523, %v522
        %v539 = vpack.c.b16 %v525, %v524
        %v540 = vpack.c.b16 %v527, %v526
        %v541 = vpack.c.b16 %v529, %v528
        %v542 = vpack.c.b16 %v531, %v530
        %v543 = vpack.c.b16 %v533, %v532
        %v544 = vpack.c.b16 %v535, %v534
        %v545 = vpack.c.b16 %v537, %v536
        %554 = vmatprep.subr.bf16.mxu0 0
        %555 = vmatpush1.bf16.msra.mxu0 %v545
        %556 = vmatprep.subr.bf16.mxu0 0
        %557 = vmatpush1.bf16.msra.mxu0 %v544
        %558 = vmatprep.subr.bf16.mxu0 0
        %559 = vmatpush1.bf16.msra.mxu0 %v543
        %560 = vmatprep.subr.bf16.mxu0 0
        %561 = vmatpush1.bf16.msra.mxu0 %v542
        %562 = vmatprep.subr.bf16.mxu0 0
        %563 = vmatpush1.bf16.msra.mxu0 %v541
        %564 = vmatprep.subr.bf16.mxu0 0
        %565 = vmatpush1.bf16.msra.mxu0 %v540
        %566 = vmatprep.subr.bf16.mxu0 0
        %567 = vmatpush1.bf16.msra.mxu0 %v539
        %568 = vmatprep.subr.bf16.mxu0 0
        %569 = vmatpush1.bf16.msra.mxu0 %v538
        %570 = vmatprep.subr.bf16.mxu0 0
        %571 = vmatpush2.bf16.msra.mxu0 0
        %572 = vmatprep.subr.bf16.mxu0 0
        %573 = vmatpush2.bf16.msra.mxu0 0
        %574 = vmatprep.subr.bf16.mxu0 0
        %575 = vmatpush2.bf16.msra.mxu0 0
        %576 = vmatprep.subr.bf16.mxu0 0
        %577 = vmatpush2.bf16.msra.mxu0 0
        %578 = vmatprep.subr.bf16.mxu0 0
        %579 = vmatpush2.bf16.msra.mxu0 0
        %580 = vmatprep.subr.bf16.mxu0 0
        %581 = vmatpush2.bf16.msra.mxu0 0
        %582 = vmatprep.subr.bf16.mxu0 0
        %583 = vmatpush2.bf16.msra.mxu0 0
        %584 = vmatprep.subr.bf16.mxu0 0
        %585 = vmatpush2.bf16.msra.mxu0 0
        %586 = vmatprep.mubr.bf16.mxu0 0
        %587 = vmatmul.mubr.bf16.gmra.mxu0 %v481
        %v588 = vpop.f32.mrf.mxu0
        %v589 = vadd.f32 %v504, %v588
        %v590 = vpop.f32.mrf.mxu0
        %v591 = vpop.f32.mrf.mxu0
        %v592 = vadd.f32 %v504, %v591
        %v593 = vpop.f32.mrf.mxu0
        %594 = vmatprep.mubr.bf16.mxu0 0
        %595 = vmatmul.mubr.bf16.gmra.mxu0 %v482
        %v596 = vpop.f32.mrf.mxu0
        %v597 = vadd.f32 %v504, %v596
        %v598 = vpop.f32.mrf.mxu0
        %v599 = vpop.f32.mrf.mxu0
        %v600 = vadd.f32 %v504, %v599
        %v601 = vpop.f32.mrf.mxu0
        %602 = vdwg.mxu0
        %v603 = vxor.u32 %v589, 2147483648
        %v604 = vxor.u32 %v592, 2147483648
        %v605 = vxor.u32 %v597, 2147483648
        %v606 = vxor.u32 %v600, 2147483648
        %v607 = vmul.f32 %v603, 1.442695
        %v608 = vpow.pop %v607
        %v609 = vmul.f32 %v604, 1.442695
        %v610 = vpow.pop %v609
        %v611 = vmul.f32 %v605, 1.442695
        %v612 = vpow.pop %v611
        %v613 = vmul.f32 %v606, 1.442695
        %v614 = vpow.pop %v613
        %v615 = vadd.f32 %v608, 1.0
        %v616 = vadd.f32 %v610, 1.0
        %v617 = vadd.f32 %v612, 1.0
        %v618 = vadd.f32 %v614, 1.0
        %v619 = vrcp.pop %v615
        %v620 = vmul.f32 1.0, %v619
        %v621 = vrcp.pop %v616
        %v622 = vmul.f32 1.0, %v621
        %v623 = vrcp.pop %v617
        %v624 = vmul.f32 1.0, %v623
        %v625 = vrcp.pop %v618
        %v626 = vmul.f32 1.0, %v625
        %v627 = vsel %vm421, %v620, 0.0
        %v628 = vsel %vm421, %v624, 0.0
        %v629 = vadd.f32 %v627, %v628
        %v630 = vsel %vm421, %v622, 0.0
        %v631 = vsel %vm421, %v626, 0.0
        %v632 = vadd.f32 %v630, %v631
        %v633 = vrcp.pop 2.0
        %v634 = vmul.f32 %v629, %v633
        %v635 = vmul.f32 %v632, %v633
        %v636 = vld [vmem:[%s381] sm:$0xff]
        %v637 = vld [vmem:[%s381 + $0x8] sm:$0xff]
        %v638 = vmul.f32 %v636, 0.9
        %v639 = vmul.f32 %v637, 0.9
        %v641 = vlaneseq
        %v642 = vshrl.u32 %v641, 7
        %v643 = vsub.s32 0, %v642
        %v644 = vrot.slane %v395, %v643
        %v646 = vmul.f32 %v634, %v644
        %v647 = vmul.f32 %v635, %v644
        %v648 = vmul.f32 %v646, 0.1
        %v649 = vmul.f32 %v647, 0.1
        %v650 = vadd.f32 %v638, %v648
        %v651 = vadd.f32 %v639, %v649
        %652 = vst.msk [vmem:[%s388] sm:$0xff] %vm421, %v650
        %653 = vst.msk [vmem:[%s388 + $0x8] sm:$0xff] %vm421, %v651
        %v654 = vmul.f32 %v650, %v391
        %v655 = vmul.f32 %v651, %v392
        %v656 = vmul.f32 %v650, %v393
        %v657 = vmul.f32 %v651, %v394
        %658 = vst.msk [vmem:[%s368] sm:$0xff] %vm421, %v654
        %659 = vst.msk [vmem:[%s368 + $0x8] sm:$0xff] %vm421, %v655
        %660 = vst.msk [vmem:[%s368 + $0x10] sm:$0xff] %vm421, %v656
        %661 = vst.msk [vmem:[%s368 + $0x18] sm:$0xff] %vm421, %v657
        %s662 = sand.u32 %s188, 1
        %s663 = scalar_lea.sflag [#allocation4], %s662
        %s664 = sand.u32 %s188, 1
        %s665 = smul.addr %s664, 32
        %s666 = scalar_lea.vmem [#allocation3], %s665
        %s667 = smul.u32 2, %s23
        %p668 = scmp.lt.s32.totalorder %s667, 7
        %s669 = scalar_select %p668, %s667, 7
        %s670 = smul.addr %s669, 8
        %s671 = scalar_lea.vmem %s8, %s670
        // Predicated region
        $region87: #{se_block2_forward.3} parent=81 // pred_check
          %p672 = pneg %p198
        $region88: #{se_block2_forward.3} parent=81 // pred_check_branch
          %674 = sbr.rel (%p672) target = $region90
        $region89: #{se_block2_forward.3} parent=81 // pred_region
          #allocation6 [shape = 'u32[6]{0}', space=smem, size = 0x18, scoped, tag = 'DMA stride descriptor']
          %s675 = smul.u32 2, %s23
          %s677 = ssub.s32 512, 512
          %678 = vsyncadd %s663, %s677
          %s679 = smul.addr %s675, 128
          %s680 = scalar_lea.hbm %s7, %s679
          %s682 = sshll.u32 1, 14
          %s683 = sxor.u32 4294967295, %s682
          %s686 = sshll.u32 7, 18
          %s687 = sxor.u32 4294967295, %s686
          %s688 = sand.u32 0, %s687
          %s690 = sor.u32 %s688, 0
          %s691 = sshll.u32 %s666, 4
          %s692 = int_to_ptr.vmem [resolvable:$true] %s691
          %698 = sst [smem:[#allocation6]] 256
          %s699 = scalar_lea.smem [#allocation6], 1
          %700 = sst [smem:[%s699]] 1024
          %s701 = scalar_lea.smem [#allocation6], 2
          %702 = sst [smem:[%s701]] 2
          %s703 = scalar_lea.smem [#allocation6], 3
          %704 = sst [smem:[%s703]] 128
          %s705 = scalar_lea.smem [#allocation6], 4
          %706 = sst [smem:[%s705]] 128
          %s707 = scalar_lea.smem [#allocation6], 5
          %708 = sst [smem:[%s707]] 8
          %710 = dma.general %s692, 512, %s680, %s663, 131072, [#allocation6], %s690, 0
        $region90: #{se_block2_forward.3} parent=81 // pred_fallthru
          _
        // Predicated region
        $region91: #{se_block2_forward.3} parent=81 // pred_check
          %p711 = pneg %p224
        $region92: #{se_block2_forward.3} parent=81 // pred_check_branch
          %713 = sbr.rel (%p711) target = $region94
        $region93: #{se_block2_forward.3} parent=81 // pred_region
          %s714 = smul.u32 2, %s23
        $region94: #{se_block2_forward.3} parent=81 // pred_fallthru
          _
      $region82: #{se_block2_forward.3} parent=5 // pred_fallthru
        _
      %p715 = scmp.le.s32.totalorder 2, %s18
      // Predicated region
      $region95: #{se_block2_forward.3} parent=5 // pred_check
        %p716 = pneg %p715
      $region96: #{se_block2_forward.3} parent=5 // pred_check_branch
        %718 = sbr.rel (%p716) target = $region98
      $region97: #{se_block2_forward.3} parent=5 // pred_region
        %s719 = ssub.s32 %s18, 2
        // Predicated region
        $region99: #{se_block2_forward.3} parent=97 // pred_check
          %p720 = pneg %p204
        $region100: #{se_block2_forward.3} parent=97 // pred_check_branch
          %722 = sbr.rel (%p720) target = $region102
        $region101: #{se_block2_forward.3} parent=97 // pred_region
          %s723 = sand.u32 %s189, 1
          %s724 = scalar_lea.sflag [#allocation4], %s723
          %s725 = sand.u32 %s189, 1
          %s726 = smul.addr %s725, 32
          %s727 = scalar_lea.vmem [#allocation3], %s726
          %728 = dma.done %s724, 512
        $region102: #{se_block2_forward.3} parent=97 // pred_fallthru
          _
        // Predicated region
        $region103: #{se_block2_forward.3} parent=97 // pred_check
          %p729 = pneg %p230
        $region104: #{se_block2_forward.3} parent=97 // pred_check_branch
          %731 = sbr.rel (%p729) target = $region106
        $region105: #{se_block2_forward.3} parent=97 // pred_region
          %s732 = smul.u32 2, %s24
          %p733 = scmp.lt.s32.totalorder %s732, 7
          %s734 = scalar_select %p733, %s732, 7
          %s735 = smul.addr %s734, 8
          %s736 = scalar_lea.vmem %s8, %s735
        $region106: #{se_block2_forward.3} parent=97 // pred_fallthru
          _
      $region98: #{se_block2_forward.3} parent=5 // pred_fallthru
        _
    $region6: #{se_block2_forward.3} parent=1 // loop_footer
      %s22 = sadd.s32 1, %s18
    $region7: #{se_block2_forward.3} parent=1 // loop_footer_branch
      %17 = sbr.rel target = $region3
    $region8: #{se_block2_forward.3} parent=1 // loop_exit
      _
    %737 = vsyncpa [#allocation4], 1
    %s738 = scalar_lea.sflag [#allocation4], 1
    %739 = vsyncpa %s738, 1

</llo_original>
